<compile_context>
chip_gen: v7x
topology: tpu7x:2x2x1
jax: 0.10.0
libtpu: 0.0.40
codegen_flags: <defaults>
</compile_context>

<pallas_src>
import functools

import numpy as np
import jax
import jax.numpy as jnp
from jax import lax
from jax.experimental import pallas as pl
from jax.experimental.pallas import tpu as pltpu

NEG_BIG = 1e12


def global_pointer_kernel(h_ref, w_ref, b_ref, cos_ref, sin_ref,
                          pad_row_ref, pad_col_ref, out_ref,
                          *, ent_type_size, inner_dim, compute_dtype):
    # h_ref:   (1, S, H)   already cast to compute_dtype on the host
    # w_ref:   (H, 4*E*D)  fused [W | W_rot], 1/sqrt(D) folded into q columns
    # b_ref:   (1, 4*E*D)  fused bias (f32), same folding
    # cos/sin: (S, D)      shared sinusoidal tables (f32)
    # pad_row: (1, 1, S)   key-position mask (additive-bias form)
    # pad_col: (1, S, 1)   key-position mask (k-row zeroing form)
    # out_ref: (1, E, S, S)
    E, D = ent_type_size, inner_dim
    S = out_ref.shape[-1]
    scale = 1.0 / (float(D) ** 0.5)

    # ---- one fused lane-dense MXU projection per batch element ------------
    x = h_ref[0]                                                   # (S, H)
    proj = jnp.dot(x, w_ref[...], preferred_element_type=jnp.float32)
    proj = proj + b_ref[...]                                       # (S, 4ED) f32
    half = 2 * E * D
    main = proj[:, :half]                                          # x@W  + b     (q cols pre-scaled)
    rot = proj[:, half:]                                           # "rotate pairs" copy (signs in W_rot)

    # ---- RoPE tables; key-side pad folded into the tables (hoisted) -------
    cos = cos_ref[...]                                             # (S, D) f32
    sin = sin_ref[...]
    pad_c = pad_col_ref[0]                                         # (S, 1)
    cos_k = cos * pad_c                                            # padded key rows -> 0
    sin_k = sin * pad_c

    # ---- additive mask bias, shared by every entity -----------------------
    row = lax.broadcasted_iota(jnp.int32, (S, S), 0)
    col = lax.broadcasted_iota(jnp.int32, (S, S), 1)
    tril = (row > col).astype(jnp.float32)                         # torch.tril(ones, -1)
    pad_row = pad_row_ref[0]                                       # (1, S)
    bias = (-(1.0 - pad_row) * NEG_BIG - tril * NEG_BIG) * scale   # (S, S)

    dn = (((1,), (1,)), ((), ()))                                  # q @ k^T
    for ent in range(E):                                           # static unroll over entity types
        a0 = ent * 2 * D
        q = main[:, a0:a0 + D] * cos + rot[:, a0:a0 + D] * sin                      # (S, D)
        k = main[:, a0 + D:a0 + 2 * D] * cos_k + rot[:, a0 + D:a0 + 2 * D] * sin_k  # (S, D)
        raw = lax.dot_general(q.astype(compute_dtype), k.astype(compute_dtype),
                              dn, preferred_element_type=jnp.float32)
        out_ref[0, ent] = (raw + bias).astype(out_ref.dtype)


def _rope_rotation_perm(ent_type_size, inner_dim):
    """Column permutation + signs so that (x @ W)[perm]*sign == rotate-pairs."""
    E, D = ent_type_size, inner_dim
    n = E * 2 * D
    j = np.arange(n)
    local = j % D
    base = j - local
    src_local = np.where(local % 2 == 0, local + 1, local - 1)     # even<-odd+1, odd<-even-1
    sign = np.where(local % 2 == 0, -1.0, 1.0).astype(np.float32)
    return base + src_local, sign


def _vmem_limit_bytes():
    """Per-generation VMEM budget: ~75% of physical, capped at 100 MiB."""
    phys = 128 * 1024 * 1024
    try:
        info = pltpu.get_tpu_info()
        phys = int(getattr(info, "vmem_capacity_bytes", phys) or phys)
    except Exception:
        pass
    return min(phys * 3 // 4, 100 * 1024 * 1024)


def _invariant_spec(block_shape, index_map, single_buffer):
    """BlockSpec for a grid-invariant input; single-buffer it when supported."""
    if single_buffer:
        try:
            return pl.BlockSpec(block_shape, index_map, pipeline_mode=pl.Buffered(1))
        except TypeError:
            pass
    return pl.BlockSpec(block_shape, index_map)


def global_pointer(last_hidden_state, dense_w, dense_b, pad_mask, *,
                   ent_type_size, inner_dim,
                   compute_dtype=jnp.bfloat16, out_dtype=jnp.float32):
    B, S, H = last_hidden_state.shape
    E, D = ent_type_size, inner_dim
    n = E * 2 * D
    scale = 1.0 / (float(D) ** 0.5)

    # ---- host-side parameter plumbing (pure layout work, no runtime compute) --
    # Fold 1/sqrt(D) into q columns (RoPE is linear -> scaling W_q scales RoPE(q)).
    cols = np.arange(n)
    col_scale = jnp.asarray(np.where((cols % (2 * D)) < D, scale, 1.0), jnp.float32)
    w_s = dense_w.astype(jnp.float32) * col_scale[None, :]
    b_s = dense_b.astype(jnp.float32) * col_scale
    # RoPE "rotate pairs" as a signed column permutation folded into the weights.
    perm, sign = _rope_rotation_perm(E, D)
    sign = jnp.asarray(sign)
    w_rot = w_s[:, perm] * sign[None, :]
    b_rot = b_s[perm] * sign
    w_fused = jnp.concatenate([w_s, w_rot], axis=1).astype(compute_dtype)   # (H, 2n)
    b_fused = jnp.concatenate([b_s, b_rot])[None, :].astype(jnp.float32)    # (1, 2n)

    # Shared (S, D) sinusoidal tables, repeat_interleave'd: [c0,c0,c1,c1,...]
    pos = jnp.arange(S, dtype=jnp.float32)[:, None]
    idx = jnp.arange(D // 2, dtype=jnp.float32)
    ang = pos * jnp.power(10000.0, -2.0 * idx / D)                 # (S, D/2)
    cos_t = jnp.repeat(jnp.cos(ang), 2, axis=-1)                   # (S, D)
    sin_t = jnp.repeat(jnp.sin(ang), 2, axis=-1)                   # (S, D)

    pad_row = pad_mask.astype(jnp.float32)[:, None, :]             # (B, 1, S) key mask
    pad_col = pad_mask.astype(jnp.float32)[:, :, None]             # (B, S, 1) column form

    x = last_hidden_state.astype(compute_dtype)                    # host-side cast (halves DMA)

    kernel = functools.partial(global_pointer_kernel, ent_type_size=E,
                               inner_dim=D, compute_dtype=compute_dtype)

    def run(single_buffer_invariants):
        grid_spec = pltpu.PrefetchScalarGridSpec(
            num_scalar_prefetch=0,
            grid=(B,),
            in_specs=[
                pl.BlockSpec((1, S, H), lambda b: (b, 0, 0)),                            # hidden states
                _invariant_spec((H, 2 * n), lambda b: (0, 0), single_buffer_invariants),  # fused [W|W_rot]
                _invariant_spec((1, 2 * n), lambda b: (0, 0), single_buffer_invariants),  # fused bias
                _invariant_spec((S, D), lambda b: (0, 0), single_buffer_invariants),      # cos (shared)
                _invariant_spec((S, D), lambda b: (0, 0), single_buffer_invariants),      # sin (shared)
                pl.BlockSpec((1, 1, S), lambda b: (b, 0, 0)),                            # pad (row form)
                pl.BlockSpec((1, S, 1), lambda b: (b, 0, 0)),                            # pad (column form)
            ],
            out_specs=pl.BlockSpec((1, E, S, S), lambda b: (b, 0, 0, 0)),
        )
        return pl.pallas_call(
            kernel,
            out_shape=jax.ShapeDtypeStruct((B, E, S, S), out_dtype),
            grid_spec=grid_spec,
            compiler_params=pltpu.CompilerParams(
                dimension_semantics=("parallel",),
                vmem_limit_bytes=_vmem_limit_bytes()),
        )(x, w_fused, b_fused, cos_t, sin_t, pad_row, pad_col)

    try:
        return run(True)
    except Exception:
        # This JAX/Mosaic build does not accept single-buffered (Buffered(1))
        # invariant inputs on the auto-pipeline -> fall back to default buffering.
        return run(False)


def global_pointer_ref(h, w, b, pad_mask, *, E, D):
    """Plain-JAX mirror of the PyTorch forward (for verification)."""
    B, S, H = h.shape
    out = h @ w + b                                              # (B, S, E*2D)
    out = out.reshape(B, S, E, 2 * D)
    qw, kw = out[..., :D], out[..., D:]
    pos = jnp.arange(S, dtype=jnp.float32)[:, None]
    idx = jnp.arange(D // 2, dtype=jnp.float32)
    ang = pos * jnp.power(10000.0, -2.0 * idx / D)
    emb = jnp.stack([jnp.sin(ang), jnp.cos(ang)], -1).reshape(S, D)
    cos_pos = jnp.repeat(emb[:, 1::2], 2, -1)[None, :, None, :]
    sin_pos = jnp.repeat(emb[:, ::2], 2, -1)[None, :, None, :]

    def rope(x):
        x2 = jnp.stack([-x[..., 1::2], x[..., ::2]], -1).reshape(x.shape)
        return x * cos_pos + x2 * sin_pos

    qw, kw = rope(qw), rope(kw)
    logits = jnp.einsum('bmhd,bnhd->bhmn', qw, kw)
    pad = pad_mask[:, None, None, :]
    logits = logits * pad - (1.0 - pad) * NEG_BIG
    tril = jnp.tril(jnp.ones((S, S), jnp.float32), -1)
    logits = logits - tril * NEG_BIG
    return logits / D ** 0.5


if __name__ == "__main__":
    B, S, H, E, D = 2, 16, 32, 2, 128

    key = jax.random.PRNGKey(0)
    k1, k2, k3 = jax.random.split(key, 3)

    # TODO(synk): the BERT `encoder` has no clean single-kernel Pallas equivalent;
    # its output (last_hidden_state) is substituted with a synthetic tensor.
    last_hidden_state = jax.random.normal(k1, (B, S, H), jnp.float32)
    dense_w = jax.random.normal(k2, (H, E * 2 * D), jnp.float32) * 0.02
    dense_b = jax.random.normal(k3, (E * 2 * D,), jnp.float32) * 0.02

    # `token_length` in the original code is a per-token {0,1} pad mask of shape (B, S).
    lengths = jnp.array([11, 16])
    pad_mask = (jnp.arange(S)[None, :] < lengths[:, None]).astype(jnp.float32)

    ref = global_pointer_ref(last_hidden_state, dense_w, dense_b, pad_mask, E=E, D=D)

    # f32 path: matches the PyTorch module to fp32 rounding.
    out = global_pointer(last_hidden_state, dense_w, dense_b, pad_mask,
                         ent_type_size=E, inner_dim=D,
                         compute_dtype=jnp.float32)
    out = jax.block_until_ready(out)
    np.testing.assert_allclose(np.asarray(out), np.asarray(ref), rtol=1e-4, atol=1e-3)

    # Default bf16 matmul inputs (f32 accumulation): MXU fast path on v5e/v6e/v7x.
    out_bf16 = global_pointer(last_hidden_state, dense_w, dense_b, pad_mask,
                              ent_type_size=E, inner_dim=D)
    out_bf16 = jax.block_until_ready(out_bf16)
    np.testing.assert_allclose(np.asarray(out_bf16), np.asarray(ref),
                               rtol=1e-1, atol=5e-2)

    print("KERNEL_OK")
</pallas_src>

<mosaic_0001>
module attributes {stable_mosaic.version = 11 : i64} {
  func.func @global_pointer_kernel(%arg0: i32, %arg1: memref<1x16x32xf32, #tpu.memory_space<vmem>>, %arg2: memref<32x1024xf32, #tpu.memory_space<vmem>>, %arg3: memref<1x1024xf32, #tpu.memory_space<vmem>>, %arg4: memref<16x128xf32, #tpu.memory_space<vmem>>, %arg5: memref<16x128xf32, #tpu.memory_space<vmem>>, %arg6: memref<1x1x16xf32, #tpu.memory_space<vmem>>, %arg7: memref<1x16x1xf32, #tpu.memory_space<vmem>>, %arg8: memref<1x2x16x16xf32, #tpu.memory_space<vmem>>) attributes {dimension_semantics = [#tpu.dimension_semantics<parallel>], iteration_bounds = array<i64: 2>, scalar_prefetch = 0 : i64, scratch_operands = 0 : i64, tpu.core_type = #tpu.core_type<tc>, window_params = [{transform_indices = @transform_0, window_bounds = array<i64: 1, 16, 32>}, {pipeline_mode = #tpu.pipeline_mode<synchronous>, transform_indices = @transform_1, window_bounds = array<i64: 32, 1024>}, {pipeline_mode = #tpu.pipeline_mode<synchronous>, transform_indices = @transform_2, window_bounds = array<i64: 1, 1024>}, {pipeline_mode = #tpu.pipeline_mode<synchronous>, transform_indices = @transform_3, window_bounds = array<i64: 16, 128>}, {pipeline_mode = #tpu.pipeline_mode<synchronous>, transform_indices = @transform_4, window_bounds = array<i64: 16, 128>}, {transform_indices = @transform_5, window_bounds = array<i64: 1, 1, 16>}, {transform_indices = @transform_6, window_bounds = array<i64: 1, 16, 1>}, {transform_indices = @transform_7, window_bounds = array<i64: 1, 2, 16, 16>}]} {
    %c0 = arith.constant 0 : index
    %c0_0 = arith.constant 0 : index
    %c0_1 = arith.constant 0 : index
    %0 = vector.load %arg1[%c0, %c0_0, %c0_1] : memref<1x16x32xf32, #tpu.memory_space<vmem>>, vector<1x16x32xf32>
    %1 = vector.shape_cast %0 : vector<1x16x32xf32> to vector<16x32xf32>
    %c0_2 = arith.constant 0 : index
    %c0_3 = arith.constant 0 : index
    %2 = vector.load %arg2[%c0_2, %c0_3] : memref<32x1024xf32, #tpu.memory_space<vmem>>, vector<32x1024xf32>
    %cst = arith.constant dense<0.000000e+00> : vector<16x1024xf32>
    %3 = tpu.matmul %1, %2, %cst {dimension_numbers = #tpu.dot_dimension_numbers<[1], [0], [0], [1], [0, 0, 1, 1], [], []>} : vector<16x32xf32>, vector<32x1024xf32>, vector<16x1024xf32> -> vector<16x1024xf32>
    %c0_4 = arith.constant 0 : index
    %c0_5 = arith.constant 0 : index
    %4 = vector.load %arg3[%c0_4, %c0_5] : memref<1x1024xf32, #tpu.memory_space<vmem>>, vector<1x1024xf32>
    %5 = vector.broadcast %4 : vector<1x1024xf32> to vector<16x1024xf32>
    %6 = arith.addf %3, %5 : vector<16x1024xf32>
    %7 = vector.extract_strided_slice %6 {offsets = [0, 0], sizes = [16, 512], strides = [1, 1]} : vector<16x1024xf32> to vector<16x512xf32>
    %8 = vector.extract_strided_slice %6 {offsets = [0, 512], sizes = [16, 512], strides = [1, 1]} : vector<16x1024xf32> to vector<16x512xf32>
    %c0_6 = arith.constant 0 : index
    %c0_7 = arith.constant 0 : index
    %9 = vector.load %arg4[%c0_6, %c0_7] : memref<16x128xf32, #tpu.memory_space<vmem>>, vector<16x128xf32>
    %c0_8 = arith.constant 0 : index
    %c0_9 = arith.constant 0 : index
    %10 = vector.load %arg5[%c0_8, %c0_9] : memref<16x128xf32, #tpu.memory_space<vmem>>, vector<16x128xf32>
    %c0_10 = arith.constant 0 : index
    %c0_11 = arith.constant 0 : index
    %c0_12 = arith.constant 0 : index
    %11 = vector.load %arg7[%c0_10, %c0_11, %c0_12] : memref<1x16x1xf32, #tpu.memory_space<vmem>>, vector<1x16x1xf32>
    %12 = vector.shape_cast %11 : vector<1x16x1xf32> to vector<16x1xf32>
    %13 = vector.broadcast %12 : vector<16x1xf32> to vector<16x128xf32>
    %14 = arith.mulf %9, %13 : vector<16x128xf32>
    %15 = vector.broadcast %12 : vector<16x1xf32> to vector<16x128xf32>
    %16 = arith.mulf %10, %15 : vector<16x128xf32>
    %17 = tpu.iota {dimensions = array<i32: 0>} : vector<16x16xi32>
    %18 = tpu.iota {dimensions = array<i32: 1>} : vector<16x16xi32>
    %19 = arith.cmpi sgt, %17, %18 : vector<16x16xi32>
    %20 = arith.extui %19 : vector<16x16xi1> to vector<16x16xi32>
    %21 = arith.sitofp %20 : vector<16x16xi32> to vector<16x16xf32>
    %c0_13 = arith.constant 0 : index
    %c0_14 = arith.constant 0 : index
    %c0_15 = arith.constant 0 : index
    %22 = vector.load %arg6[%c0_13, %c0_14, %c0_15] : memref<1x1x16xf32, #tpu.memory_space<vmem>>, vector<1x1x16xf32>
    %23 = vector.shape_cast %22 : vector<1x1x16xf32> to vector<1x16xf32>
    %cst_16 = arith.constant 1.000000e+00 : f32
    %24 = vector.broadcast %cst_16 : f32 to vector<1x16xf32>
    %25 = arith.subf %24, %23 : vector<1x16xf32>
    %cst_17 = arith.constant 0.000000e+00 : f32
    %26 = vector.broadcast %cst_17 : f32 to vector<1x16xf32>
    %27 = arith.subf %26, %25 : vector<1x16xf32>
    %cst_18 = arith.constant 9.99999995E+11 : f32
    %28 = vector.broadcast %cst_18 : f32 to vector<1x16xf32>
    %29 = arith.mulf %27, %28 : vector<1x16xf32>
    %cst_19 = arith.constant 9.99999995E+11 : f32
    %30 = vector.broadcast %cst_19 : f32 to vector<16x16xf32>
    %31 = arith.mulf %21, %30 : vector<16x16xf32>
    %32 = vector.broadcast %29 : vector<1x16xf32> to vector<16x16xf32>
    %33 = arith.subf %32, %31 : vector<16x16xf32>
    %cst_20 = arith.constant 0.0883883461 : f32
    %34 = vector.broadcast %cst_20 : f32 to vector<16x16xf32>
    %35 = arith.mulf %33, %34 : vector<16x16xf32>
    %36 = vector.extract_strided_slice %7 {offsets = [0, 0], sizes = [16, 128], strides = [1, 1]} : vector<16x512xf32> to vector<16x128xf32>
    %37 = arith.mulf %36, %9 : vector<16x128xf32>
    %38 = vector.extract_strided_slice %8 {offsets = [0, 0], sizes = [16, 128], strides = [1, 1]} : vector<16x512xf32> to vector<16x128xf32>
    %39 = arith.mulf %38, %10 : vector<16x128xf32>
    %40 = arith.addf %37, %39 : vector<16x128xf32>
    %41 = vector.extract_strided_slice %7 {offsets = [0, 128], sizes = [16, 128], strides = [1, 1]} : vector<16x512xf32> to vector<16x128xf32>
    %42 = arith.mulf %41, %14 : vector<16x128xf32>
    %43 = vector.extract_strided_slice %8 {offsets = [0, 128], sizes = [16, 128], strides = [1, 1]} : vector<16x512xf32> to vector<16x128xf32>
    %44 = arith.mulf %43, %16 : vector<16x128xf32>
    %45 = arith.addf %42, %44 : vector<16x128xf32>
    %cst_21 = arith.constant dense<0.000000e+00> : vector<16x16xf32>
    %46 = tpu.matmul %40, %45, %cst_21 {dimension_numbers = #tpu.dot_dimension_numbers<[1], [1], [0], [0], [0, 0, 1, 0], [], []>} : vector<16x128xf32>, vector<16x128xf32>, vector<16x16xf32> -> vector<16x16xf32>
    %47 = arith.addf %46, %35 : vector<16x16xf32>
    %c0_22 = arith.constant 0 : index
    %c0_23 = arith.constant 0 : index
    %c0_24 = arith.constant 0 : index
    %c0_25 = arith.constant 0 : index
    %48 = vector.load %arg8[%c0_22, %c0_23, %c0_24, %c0_25] : memref<1x2x16x16xf32, #tpu.memory_space<vmem>>, vector<1x1x16x16xf32>
    %49 = vector.shape_cast %48 : vector<1x1x16x16xf32> to vector<16x16xf32>
    %50 = vector.shape_cast %47 : vector<16x16xf32> to vector<1x1x16x16xf32>
    tpu.vector_store %arg8[%c0_22, %c0_23, %c0_24, %c0_25], %50 {strides = array<i32>} : memref<1x2x16x16xf32, #tpu.memory_space<vmem>>, vector<1x1x16x16xf32>,
    %51 = vector.extract_strided_slice %7 {offsets = [0, 256], sizes = [16, 128], strides = [1, 1]} : vector<16x512xf32> to vector<16x128xf32>
    %52 = arith.mulf %51, %9 : vector<16x128xf32>
    %53 = vector.extract_strided_slice %8 {offsets = [0, 256], sizes = [16, 128], strides = [1, 1]} : vector<16x512xf32> to vector<16x128xf32>
    %54 = arith.mulf %53, %10 : vector<16x128xf32>
    %55 = arith.addf %52, %54 : vector<16x128xf32>
    %56 = vector.extract_strided_slice %7 {offsets = [0, 384], sizes = [16, 128], strides = [1, 1]} : vector<16x512xf32> to vector<16x128xf32>
    %57 = arith.mulf %56, %14 : vector<16x128xf32>
    %58 = vector.extract_strided_slice %8 {offsets = [0, 384], sizes = [16, 128], strides = [1, 1]} : vector<16x512xf32> to vector<16x128xf32>
    %59 = arith.mulf %58, %16 : vector<16x128xf32>
    %60 = arith.addf %57, %59 : vector<16x128xf32>
    %cst_26 = arith.constant dense<0.000000e+00> : vector<16x16xf32>
    %61 = tpu.matmul %55, %60, %cst_26 {dimension_numbers = #tpu.dot_dimension_numbers<[1], [1], [0], [0], [0, 0, 1, 0], [], []>} : vector<16x128xf32>, vector<16x128xf32>, vector<16x16xf32> -> vector<16x16xf32>
    %62 = arith.addf %61, %35 : vector<16x16xf32>
    %c0_27 = arith.constant 0 : index
    %c1 = arith.constant 1 : index
    %c0_28 = arith.constant 0 : index
    %c0_29 = arith.constant 0 : index
    %63 = vector.load %arg8[%c0_27, %c1, %c0_28, %c0_29] : memref<1x2x16x16xf32, #tpu.memory_space<vmem>>, vector<1x1x16x16xf32>
    %64 = vector.shape_cast %63 : vector<1x1x16x16xf32> to vector<16x16xf32>
    %65 = vector.shape_cast %62 : vector<16x16xf32> to vector<1x1x16x16xf32>
    tpu.vector_store %arg8[%c0_27, %c1, %c0_28, %c0_29], %65 {strides = array<i32>} : memref<1x2x16x16xf32, #tpu.memory_space<vmem>>, vector<1x1x16x16xf32>,
    return
  }
  func.func @transform_0(%arg0: i32) -> (i32, i32, i32) {
    %c0_i32 = arith.constant 0 : i32
    %c0_i32_0 = arith.constant 0 : i32
    %c0_i32_1 = arith.constant 0 : i32
    return %arg0, %c0_i32, %c0_i32_0 : i32, i32, i32
  }
  func.func @transform_1(%arg0: i32) -> (i32, i32) {
    %c0_i32 = arith.constant 0 : i32
    %c0_i32_0 = arith.constant 0 : i32
    %c0_i32_1 = arith.constant 0 : i32
    return %c0_i32, %c0_i32_0 : i32, i32
  }
  func.func @transform_2(%arg0: i32) -> (i32, i32) {
    %c0_i32 = arith.constant 0 : i32
    %c0_i32_0 = arith.constant 0 : i32
    %c0_i32_1 = arith.constant 0 : i32
    return %c0_i32, %c0_i32_0 : i32, i32
  }
  func.func @transform_3(%arg0: i32) -> (i32, i32) {
    %c0_i32 = arith.constant 0 : i32
    %c0_i32_0 = arith.constant 0 : i32
    %c0_i32_1 = arith.constant 0 : i32
    return %c0_i32, %c0_i32_0 : i32, i32
  }
  func.func @transform_4(%arg0: i32) -> (i32, i32) {
    %c0_i32 = arith.constant 0 : i32
    %c0_i32_0 = arith.constant 0 : i32
    %c0_i32_1 = arith.constant 0 : i32
    return %c0_i32, %c0_i32_0 : i32, i32
  }
  func.func @transform_5(%arg0: i32) -> (i32, i32, i32) {
    %c0_i32 = arith.constant 0 : i32
    %c0_i32_0 = arith.constant 0 : i32
    %c0_i32_1 = arith.constant 0 : i32
    return %arg0, %c0_i32, %c0_i32_0 : i32, i32, i32
  }
  func.func @transform_6(%arg0: i32) -> (i32, i32, i32) {
    %c0_i32 = arith.constant 0 : i32
    %c0_i32_0 = arith.constant 0 : i32
    %c0_i32_1 = arith.constant 0 : i32
    return %arg0, %c0_i32, %c0_i32_0 : i32, i32, i32
  }
  func.func @transform_7(%arg0: i32) -> (i32, i32, i32, i32) {
    %c0_i32 = arith.constant 0 : i32
    %c0_i32_0 = arith.constant 0 : i32
    %c0_i32_1 = arith.constant 0 : i32
    %c0_i32_2 = arith.constant 0 : i32
    return %arg0, %c0_i32, %c0_i32_0, %c0_i32_1 : i32, i32, i32, i32
  }
}

module attributes {stable_mosaic.version = 11 : i64} {
  func.func @global_pointer_kernel(%arg0: i32, %arg1: memref<1x16x32xf32, #tpu.memory_space<vmem>>, %arg2: memref<32x1024xf32, #tpu.memory_space<vmem>>, %arg3: memref<1x1024xf32, #tpu.memory_space<vmem>>, %arg4: memref<16x128xf32, #tpu.memory_space<vmem>>, %arg5: memref<16x128xf32, #tpu.memory_space<vmem>>, %arg6: memref<1x1x16xf32, #tpu.memory_space<vmem>>, %arg7: memref<1x16x1xf32, #tpu.memory_space<vmem>>, %arg8: memref<1x2x16x16xf32, #tpu.memory_space<vmem>>) attributes {dimension_semantics = [#tpu.dimension_semantics<parallel>], iteration_bounds = array<i64: 2>, scalar_prefetch = 0 : i64, scratch_operands = 0 : i64, tpu.core_type = #tpu.core_type<tc>, window_params = [{transform_indices = @transform_0, window_bounds = array<i64: 1, 16, 32>}, {pipeline_mode = #tpu.pipeline_mode<synchronous>, transform_indices = @transform_1, window_bounds = array<i64: 32, 1024>}, {pipeline_mode = #tpu.pipeline_mode<synchronous>, transform_indices = @transform_2, window_bounds = array<i64: 1, 1024>}, {pipeline_mode = #tpu.pipeline_mode<synchronous>, transform_indices = @transform_3, window_bounds = array<i64: 16, 128>}, {pipeline_mode = #tpu.pipeline_mode<synchronous>, transform_indices = @transform_4, window_bounds = array<i64: 16, 128>}, {transform_indices = @transform_5, window_bounds = array<i64: 1, 1, 16>}, {transform_indices = @transform_6, window_bounds = array<i64: 1, 16, 1>}, {transform_indices = @transform_7, window_bounds = array<i64: 1, 2, 16, 16>}]} {
    %c0 = arith.constant 0 : index
    %c0_0 = arith.constant 0 : index
    %c0_1 = arith.constant 0 : index
    %0 = vector.load %arg1[%c0, %c0_0, %c0_1] : memref<1x16x32xf32, #tpu.memory_space<vmem>>, vector<1x16x32xf32>
    %1 = vector.shape_cast %0 : vector<1x16x32xf32> to vector<16x32xf32>
    %c0_2 = arith.constant 0 : index
    %c0_3 = arith.constant 0 : index
    %2 = vector.load %arg2[%c0_2, %c0_3] : memref<32x1024xf32, #tpu.memory_space<vmem>>, vector<32x1024xf32>
    %cst = arith.constant dense<0.000000e+00> : vector<16x1024xf32>
    %3 = tpu.matmul %1, %2, %cst {dimension_numbers = #tpu.dot_dimension_numbers<[1], [0], [0], [1], [0, 0, 1, 1], [], []>} : vector<16x32xf32>, vector<32x1024xf32>, vector<16x1024xf32> -> vector<16x1024xf32>
    %c0_4 = arith.constant 0 : index
    %c0_5 = arith.constant 0 : index
    %4 = vector.load %arg3[%c0_4, %c0_5] : memref<1x1024xf32, #tpu.memory_space<vmem>>, vector<1x1024xf32>
    %5 = vector.broadcast %4 : vector<1x1024xf32> to vector<16x1024xf32>
    %6 = arith.addf %3, %5 : vector<16x1024xf32>
    %7 = vector.extract_strided_slice %6 {offsets = [0, 0], sizes = [16, 512], strides = [1, 1]} : vector<16x1024xf32> to vector<16x512xf32>
    %8 = vector.extract_strided_slice %6 {offsets = [0, 512], sizes = [16, 512], strides = [1, 1]} : vector<16x1024xf32> to vector<16x512xf32>
    %c0_6 = arith.constant 0 : index
    %c0_7 = arith.constant 0 : index
    %9 = vector.load %arg4[%c0_6, %c0_7] : memref<16x128xf32, #tpu.memory_space<vmem>>, vector<16x128xf32>
    %c0_8 = arith.constant 0 : index
    %c0_9 = arith.constant 0 : index
    %10 = vector.load %arg5[%c0_8, %c0_9] : memref<16x128xf32, #tpu.memory_space<vmem>>, vector<16x128xf32>
    %c0_10 = arith.constant 0 : index
    %c0_11 = arith.constant 0 : index
    %c0_12 = arith.constant 0 : index
    %11 = vector.load %arg7[%c0_10, %c0_11, %c0_12] : memref<1x16x1xf32, #tpu.memory_space<vmem>>, vector<1x16x1xf32>
    %12 = vector.shape_cast %11 : vector<1x16x1xf32> to vector<16x1xf32>
    %13 = vector.broadcast %12 : vector<16x1xf32> to vector<16x128xf32>
    %14 = arith.mulf %9, %13 : vector<16x128xf32>
    %15 = vector.broadcast %12 : vector<16x1xf32> to vector<16x128xf32>
    %16 = arith.mulf %10, %15 : vector<16x128xf32>
    %17 = tpu.iota {dimensions = array<i32: 0>} : vector<16x16xi32>
    %18 = tpu.iota {dimensions = array<i32: 1>} : vector<16x16xi32>
    %19 = arith.cmpi sgt, %17, %18 : vector<16x16xi32>
    %20 = arith.extui %19 : vector<16x16xi1> to vector<16x16xi32>
    %21 = arith.sitofp %20 : vector<16x16xi32> to vector<16x16xf32>
    %c0_13 = arith.constant 0 : index
    %c0_14 = arith.constant 0 : index
    %c0_15 = arith.constant 0 : index
    %22 = vector.load %arg6[%c0_13, %c0_14, %c0_15] : memref<1x1x16xf32, #tpu.memory_space<vmem>>, vector<1x1x16xf32>
    %23 = vector.shape_cast %22 : vector<1x1x16xf32> to vector<1x16xf32>
    %cst_16 = arith.constant 1.000000e+00 : f32
    %24 = vector.broadcast %cst_16 : f32 to vector<1x16xf32>
    %25 = arith.subf %24, %23 : vector<1x16xf32>
    %cst_17 = arith.constant 0.000000e+00 : f32
    %26 = vector.broadcast %cst_17 : f32 to vector<1x16xf32>
    %27 = arith.subf %26, %25 : vector<1x16xf32>
    %cst_18 = arith.constant 9.99999995E+11 : f32
    %28 = vector.broadcast %cst_18 : f32 to vector<1x16xf32>
    %29 = arith.mulf %27, %28 : vector<1x16xf32>
    %cst_19 = arith.constant 9.99999995E+11 : f32
    %30 = vector.broadcast %cst_19 : f32 to vector<16x16xf32>
    %31 = arith.mulf %21, %30 : vector<16x16xf32>
    %32 = vector.broadcast %29 : vector<1x16xf32> to vector<16x16xf32>
    %33 = arith.subf %32, %31 : vector<16x16xf32>
    %cst_20 = arith.constant 0.0883883461 : f32
    %34 = vector.broadcast %cst_20 : f32 to vector<16x16xf32>
    %35 = arith.mulf %33, %34 : vector<16x16xf32>
    %36 = vector.extract_strided_slice %7 {offsets = [0, 0], sizes = [16, 128], strides = [1, 1]} : vector<16x512xf32> to vector<16x128xf32>
    %37 = arith.mulf %36, %9 : vector<16x128xf32>
    %38 = vector.extract_strided_slice %8 {offsets = [0, 0], sizes = [16, 128], strides = [1, 1]} : vector<16x512xf32> to vector<16x128xf32>
    %39 = arith.mulf %38, %10 : vector<16x128xf32>
    %40 = arith.addf %37, %39 : vector<16x128xf32>
    %41 = vector.extract_strided_slice %7 {offsets = [0, 128], sizes = [16, 128], strides = [1, 1]} : vector<16x512xf32> to vector<16x128xf32>
    %42 = arith.mulf %41, %14 : vector<16x128xf32>
    %43 = vector.extract_strided_slice %8 {offsets = [0, 128], sizes = [16, 128], strides = [1, 1]} : vector<16x512xf32> to vector<16x128xf32>
    %44 = arith.mulf %43, %16 : vector<16x128xf32>
    %45 = arith.addf %42, %44 : vector<16x128xf32>
    %cst_21 = arith.constant dense<0.000000e+00> : vector<16x16xf32>
    %46 = tpu.matmul %40, %45, %cst_21 {dimension_numbers = #tpu.dot_dimension_numbers<[1], [1], [0], [0], [0, 0, 1, 0], [], []>} : vector<16x128xf32>, vector<16x128xf32>, vector<16x16xf32> -> vector<16x16xf32>
    %47 = arith.addf %46, %35 : vector<16x16xf32>
    %c0_22 = arith.constant 0 : index
    %c0_23 = arith.constant 0 : index
    %c0_24 = arith.constant 0 : index
    %c0_25 = arith.constant 0 : index
    %48 = vector.load %arg8[%c0_22, %c0_23, %c0_24, %c0_25] : memref<1x2x16x16xf32, #tpu.memory_space<vmem>>, vector<1x1x16x16xf32>
    %49 = vector.shape_cast %48 : vector<1x1x16x16xf32> to vector<16x16xf32>
    %50 = vector.shape_cast %47 : vector<16x16xf32> to vector<1x1x16x16xf32>
    tpu.vector_store %arg8[%c0_22, %c0_23, %c0_24, %c0_25], %50 {strides = array<i32>} : memref<1x2x16x16xf32, #tpu.memory_space<vmem>>, vector<1x1x16x16xf32>,
    %51 = vector.extract_strided_slice %7 {offsets = [0, 256], sizes = [16, 128], strides = [1, 1]} : vector<16x512xf32> to vector<16x128xf32>
    %52 = arith.mulf %51, %9 : vector<16x128xf32>
    %53 = vector.extract_strided_slice %8 {offsets = [0, 256], sizes = [16, 128], strides = [1, 1]} : vector<16x512xf32> to vector<16x128xf32>
    %54 = arith.mulf %53, %10 : vector<16x128xf32>
    %55 = arith.addf %52, %54 : vector<16x128xf32>
    %56 = vector.extract_strided_slice %7 {offsets = [0, 384], sizes = [16, 128], strides = [1, 1]} : vector<16x512xf32> to vector<16x128xf32>
    %57 = arith.mulf %56, %14 : vector<16x128xf32>
    %58 = vector.extract_strided_slice %8 {offsets = [0, 384], sizes = [16, 128], strides = [1, 1]} : vector<16x512xf32> to vector<16x128xf32>
    %59 = arith.mulf %58, %16 : vector<16x128xf32>
    %60 = arith.addf %57, %59 : vector<16x128xf32>
    %cst_26 = arith.constant dense<0.000000e+00> : vector<16x16xf32>
    %61 = tpu.matmul %55, %60, %cst_26 {dimension_numbers = #tpu.dot_dimension_numbers<[1], [1], [0], [0], [0, 0, 1, 0], [], []>} : vector<16x128xf32>, vector<16x128xf32>, vector<16x16xf32> -> vector<16x16xf32>
    %62 = arith.addf %61, %35 : vector<16x16xf32>
    %c0_27 = arith.constant 0 : index
    %c1 = arith.constant 1 : index
    %c0_28 = arith.constant 0 : index
    %c0_29 = arith.constant 0 : index
    %63 = vector.load %arg8[%c0_27, %c1, %c0_28, %c0_29] : memref<1x2x16x16xf32, #tpu.memory_space<vmem>>, vector<1x1x16x16xf32>
    %64 = vector.shape_cast %63 : vector<1x1x16x16xf32> to vector<16x16xf32>
    %65 = vector.shape_cast %62 : vector<16x16xf32> to vector<1x1x16x16xf32>
    tpu.vector_store %arg8[%c0_27, %c1, %c0_28, %c0_29], %65 {strides = array<i32>} : memref<1x2x16x16xf32, #tpu.memory_space<vmem>>, vector<1x1x16x16xf32>,
    return
  }
  func.func @transform_0(%arg0: i32) -> (i32, i32, i32) {
    %c0_i32 = arith.constant 0 : i32
    %c0_i32_0 = arith.constant 0 : i32
    %c0_i32_1 = arith.constant 0 : i32
    return %arg0, %c0_i32, %c0_i32_0 : i32, i32, i32
  }
  func.func @transform_1(%arg0: i32) -> (i32, i32) {
    %c0_i32 = arith.constant 0 : i32
    %c0_i32_0 = arith.constant 0 : i32
    %c0_i32_1 = arith.constant 0 : i32
    return %c0_i32, %c0_i32_0 : i32, i32
  }
  func.func @transform_2(%arg0: i32) -> (i32, i32) {
    %c0_i32 = arith.constant 0 : i32
    %c0_i32_0 = arith.constant 0 : i32
    %c0_i32_1 = arith.constant 0 : i32
    return %c0_i32, %c0_i32_0 : i32, i32
  }
  func.func @transform_3(%arg0: i32) -> (i32, i32) {
    %c0_i32 = arith.constant 0 : i32
    %c0_i32_0 = arith.constant 0 : i32
    %c0_i32_1 = arith.constant 0 : i32
    return %c0_i32, %c0_i32_0 : i32, i32
  }
  func.func @transform_4(%arg0: i32) -> (i32, i32) {
    %c0_i32 = arith.constant 0 : i32
    %c0_i32_0 = arith.constant 0 : i32
    %c0_i32_1 = arith.constant 0 : i32
    return %c0_i32, %c0_i32_0 : i32, i32
  }
  func.func @transform_5(%arg0: i32) -> (i32, i32, i32) {
    %c0_i32 = arith.constant 0 : i32
    %c0_i32_0 = arith.constant 0 : i32
    %c0_i32_1 = arith.constant 0 : i32
    return %arg0, %c0_i32, %c0_i32_0 : i32, i32, i32
  }
  func.func @transform_6(%arg0: i32) -> (i32, i32, i32) {
    %c0_i32 = arith.constant 0 : i32
    %c0_i32_0 = arith.constant 0 : i32
    %c0_i32_1 = arith.constant 0 : i32
    return %arg0, %c0_i32, %c0_i32_0 : i32, i32, i32
  }
  func.func @transform_7(%arg0: i32) -> (i32, i32, i32, i32) {
    %c0_i32 = arith.constant 0 : i32
    %c0_i32_0 = arith.constant 0 : i32
    %c0_i32_1 = arith.constant 0 : i32
    %c0_i32_2 = arith.constant 0 : i32
    return %arg0, %c0_i32, %c0_i32_0, %c0_i32_1 : i32, i32, i32, i32
  }
}

</mosaic_0001>

<llo_original>
// kernel: tpu_custom_call.1
$region0: #{tpu_custom_call.1}
  #allocation0 [shape = 'u32[]', space=smem, size = 0x4, offset = 0x4, fixed_abs, tag = 'smem constant byte address 0x4 - core index']
  #allocation1 [shape = 'u32[144,128]{1,0:T(1,128)}', space=vmem, size = 0x12000, scoped, tag = 'internal scratch']
  %s0 = inlined_call_operand.hbm [shape: f32[2,16,32], index: 0, kind: input, shape index: {}]
  %s1 = inlined_call_operand.hbm [shape: f32[32,1024], index: 1, kind: input, shape index: {}]
  %s2 = inlined_call_operand.hbm [shape: f32[1,1024], index: 2, kind: input, shape index: {}]
  %s3 = inlined_call_operand.hbm [shape: f32[16,128], index: 3, kind: input, shape index: {}]
  %s4 = inlined_call_operand.hbm [shape: f32[16,128], index: 4, kind: input, shape index: {}]
  %s5 = inlined_call_operand.hbm [shape: f32[2,1,16], index: 5, kind: input, shape index: {}]
  %s6 = inlined_call_operand.hbm [shape: f32[2,16,1], index: 6, kind: input, shape index: {}]
  %s7 = inlined_call_operand.hbm [shape: f32[2,2,16,16], index: 7, kind: output, shape index: {}]
  %s8 = sld [smem:[#allocation0]]
  $region89: #{tpu_custom_call.1} parent=0
    _
  %s10 = ssub.s32 1, %s8
  %s11 = scalar_select 0, %s10, %s8
  $region1: #{tpu_custom_call.1} parent=0
    #allocation2 [shape = 'u8[16384]{0}', space=vmem, size = 0x4000, scoped, tag = 'input window, operand 0']
    #allocation3 [shape = 's32[2]{0}', space=sflag, size = 0x8, scoped, tag = 'scoped memory for tpu_custom_call.1']
    #allocation4 [shape = 's32[2]{0}', space=sflag, size = 0x8, scoped, tag = 'scoped memory for tpu_custom_call.1']
    #allocation5 [shape = 'u8[131072]{0}', space=vmem, size = 0x20000, scoped, tag = 'input window, operand 1, single buffered']
    #allocation6 [shape = 's32[1]{0}', space=sflag, size = 0x4, scoped, tag = 'scoped memory for tpu_custom_call.1']
    #allocation7 [shape = 'u8[4096]{0}', space=vmem, size = 0x1000, scoped, tag = 'input window, operand 2, single buffered']
    #allocation8 [shape = 'u8[8192]{0}', space=vmem, size = 0x2000, scoped, tag = 'input window, operand 3, single buffered']
    #allocation9 [shape = 's32[1]{0}', space=sflag, size = 0x4, scoped, tag = 'scoped memory for tpu_custom_call.1']
    #allocation10 [shape = 'u8[8192]{0}', space=vmem, size = 0x2000, scoped, tag = 'input window, operand 4, single buffered']
    #allocation11 [shape = 'u8[1024]{0}', space=vmem, size = 0x400, scoped, tag = 'input window, operand 5']
    #allocation12 [shape = 's32[2]{0}', space=sflag, size = 0x8, scoped, tag = 'scoped memory for tpu_custom_call.1']
    #allocation13 [shape = 'u8[16384]{0}', space=vmem, size = 0x4000, scoped, tag = 'input window, operand 6']
    #allocation14 [shape = 'u8[32768]{0}', space=vmem, size = 0x8000, scoped, tag = 'output window, operand 0']
    %12 = vsyncpa [#allocation3], 0
    %s13 = scalar_lea.sflag [#allocation3], 1
    %14 = vsyncpa %s13, 0
    %15 = vsyncpa [#allocation6], 0
    %16 = vsyncpa [#allocation9], 0
    %17 = vsyncpa [#allocation12], 0
    %s18 = scalar_lea.sflag [#allocation12], 1
    %19 = vsyncpa %s18, 0
    %20 = vsyncpa [#allocation4], 0
    %s21 = scalar_lea.sflag [#allocation4], 1
    %22 = vsyncpa %s21, 0
    loop: start=0, step=1, limit=4
    $region2: #{tpu_custom_call.1} parent=1 // loop_pre_header
      _
    $region3: #{tpu_custom_call.1} parent=1 // loop_header
      %s24 = sphi 0, %s28
      %p25 = scmp.ge.s32.totalorder %s24, 4
      %s34 = sphi 0, %s36
      %s37 = sphi 0, %s34
      %s38 = sphi 0, %s37
      %s54 = sphi 0, %s38
      %s58 = sphi 0, %s58
      %s60 = sphi 0, %s58
      %s61 = sphi 0, %s60
      %s75 = sphi 0, %s61
      %s79 = sphi 0, %s79
      %s81 = sphi 0, %s79
      %s82 = sphi 0, %s81
      %s96 = sphi 0, %s82
      %s100 = sphi 0, %s100
      %s102 = sphi 0, %s100
      %s103 = sphi 0, %s102
      %s117 = sphi 0, %s103
      %s121 = sphi 0, %s121
      %s123 = sphi 0, %s121
      %s124 = sphi 0, %s123
      %s138 = sphi 0, %s124
      %s144 = sphi 0, %s146
      %s147 = sphi 0, %s144
      %s148 = sphi 0, %s147
      %s164 = sphi 0, %s148
      %s170 = sphi 0, %s172
      %s173 = sphi 0, %s170
      %s174 = sphi 0, %s173
      %s190 = sphi 0, %s174
      %s196 = sphi 0, %s198
      %s199 = sphi 0, %s196
      %s200 = sphi 0, %s199
      %s216 = sphi 0, %s200
    $region4: #{tpu_custom_call.1} parent=1 // loop_header_branch
      %27 = sbr.rel (%p25) target = $region8
    $region5: #{tpu_custom_call.1} parent=1 // loop_body
      %s29 = ssub.s32 %s24, 1
      %s30 = ssub.s32 %s24, 2
      %s31 = sadd.s32 %s24, 1
      %s32 = ssub.s32 %s24, %s31
      %p33 = scmp.eq.s32.totalorder %s32, 0
      %s35 = sadd.s32 %s34, 1
      %s36 = scalar_select %p33, %s34, %s35
      %p39 = pneg %p33
      %p40 = scmp.eq.s32.totalorder %s24, 1
      %p41 = por %p39, %p40
      %p42 = scmp.ne.s32.totalorder %s34, %s37
      %p43 = scmp.eq.s32.totalorder %s24, 0
      %p44 = por %p42, %p43
      %p45 = scmp.ne.s32.totalorder %s34, %s37
      %p46 = scmp.eq.s32.totalorder %s29, 1
      %p47 = por %p45, %p46
      %p48 = scmp.ne.s32.totalorder %s37, %s38
      %p49 = scmp.eq.s32.totalorder %s29, 0
      %p50 = por %p48, %p49
      %p51 = scmp.ne.s32.totalorder %s37, %s38
      %p52 = scmp.eq.s32.totalorder %s30, 1
      %p53 = por %p51, %p52
      %p55 = scmp.ne.s32.totalorder %s38, %s54
      %p56 = scmp.eq.s32.totalorder %s30, 0
      %p57 = por %p55, %p56
      %s59 = sadd.s32 %s58, 1
      %p62 = scmp.eq.s32.totalorder %s24, 1
      %p63 = scmp.ne.s32.totalorder %s58, %s60
      %p64 = scmp.eq.s32.totalorder %s24, 0
      %p65 = por %p63, %p64
      %p66 = scmp.ne.s32.totalorder %s58, %s60
      %p67 = scmp.eq.s32.totalorder %s29, 1
      %p68 = por %p66, %p67
      %p69 = scmp.ne.s32.totalorder %s60, %s61
      %p70 = scmp.eq.s32.totalorder %s29, 0
      %p71 = por %p69, %p70
      %p72 = scmp.ne.s32.totalorder %s60, %s61
      %p73 = scmp.eq.s32.totalorder %s30, 1
      %p74 = por %p72, %p73
      %p76 = scmp.ne.s32.totalorder %s61, %s75
      %p77 = scmp.eq.s32.totalorder %s30, 0
      %p78 = por %p76, %p77
      %s80 = sadd.s32 %s79, 1
      %p83 = scmp.eq.s32.totalorder %s24, 1
      %p84 = scmp.ne.s32.totalorder %s79, %s81
      %p85 = scmp.eq.s32.totalorder %s24, 0
      %p86 = por %p84, %p85
      %p87 = scmp.ne.s32.totalorder %s79, %s81
      %p88 = scmp.eq.s32.totalorder %s29, 1
      %p89 = por %p87, %p88
      %p90 = scmp.ne.s32.totalorder %s81, %s82
      %p91 = scmp.eq.s32.totalorder %s29, 0
      %p92 = por %p90, %p91
      %p93 = scmp.ne.s32.totalorder %s81, %s82
      %p94 = scmp.eq.s32.totalorder %s30, 1
      %p95 = por %p93, %p94
      %p97 = scmp.ne.s32.totalorder %s82, %s96
      %p98 = scmp.eq.s32.totalorder %s30, 0
      %p99 = por %p97, %p98
      %s101 = sadd.s32 %s100, 1
      %p104 = scmp.eq.s32.totalorder %s24, 1
      %p105 = scmp.ne.s32.totalorder %s100, %s102
      %p106 = scmp.eq.s32.totalorder %s24, 0
      %p107 = por %p105, %p106
      %p108 = scmp.ne.s32.totalorder %s100, %s102
      %p109 = scmp.eq.s32.totalorder %s29, 1
      %p110 = por %p108, %p109
      %p111 = scmp.ne.s32.totalorder %s102, %s103
      %p112 = scmp.eq.s32.totalorder %s29, 0
      %p113 = por %p111, %p112
      %p114 = scmp.ne.s32.totalorder %s102, %s103
      %p115 = scmp.eq.s32.totalorder %s30, 1
      %p116 = por %p114, %p115
      %p118 = scmp.ne.s32.totalorder %s103, %s117
      %p119 = scmp.eq.s32.totalorder %s30, 0
      %p120 = por %p118, %p119
      %s122 = sadd.s32 %s121, 1
      %p125 = scmp.eq.s32.totalorder %s24, 1
      %p126 = scmp.ne.s32.totalorder %s121, %s123
      %p127 = scmp.eq.s32.totalorder %s24, 0
      %p128 = por %p126, %p127
      %p129 = scmp.ne.s32.totalorder %s121, %s123
      %p130 = scmp.eq.s32.totalorder %s29, 1
      %p131 = por %p129, %p130
      %p132 = scmp.ne.s32.totalorder %s123, %s124
      %p133 = scmp.eq.s32.totalorder %s29, 0
      %p134 = por %p132, %p133
      %p135 = scmp.ne.s32.totalorder %s123, %s124
      %p136 = scmp.eq.s32.totalorder %s30, 1
      %p137 = por %p135, %p136
      %p139 = scmp.ne.s32.totalorder %s124, %s138
      %p140 = scmp.eq.s32.totalorder %s30, 0
      %p141 = por %p139, %p140
      %s142 = ssub.s32 %s24, %s31
      %p143 = scmp.eq.s32.totalorder %s142, 0
      %s145 = sadd.s32 %s144, 1
      %s146 = scalar_select %p143, %s144, %s145
      %p149 = pneg %p143
      %p150 = scmp.eq.s32.totalorder %s24, 1
      %p151 = por %p149, %p150
      %p152 = scmp.ne.s32.totalorder %s144, %s147
      %p153 = scmp.eq.s32.totalorder %s24, 0
      %p154 = por %p152, %p153
      %p155 = scmp.ne.s32.totalorder %s144, %s147
      %p156 = scmp.eq.s32.totalorder %s29, 1
      %p157 = por %p155, %p156
      %p158 = scmp.ne.s32.totalorder %s147, %s148
      %p159 = scmp.eq.s32.totalorder %s29, 0
      %p160 = por %p158, %p159
      %p161 = scmp.ne.s32.totalorder %s147, %s148
      %p162 = scmp.eq.s32.totalorder %s30, 1
      %p163 = por %p161, %p162
      %p165 = scmp.ne.s32.totalorder %s148, %s164
      %p166 = scmp.eq.s32.totalorder %s30, 0
      %p167 = por %p165, %p166
      %s168 = ssub.s32 %s24, %s31
      %p169 = scmp.eq.s32.totalorder %s168, 0
      %s171 = sadd.s32 %s170, 1
      %s172 = scalar_select %p169, %s170, %s171
      %p175 = pneg %p169
      %p176 = scmp.eq.s32.totalorder %s24, 1
      %p177 = por %p175, %p176
      %p178 = scmp.ne.s32.totalorder %s170, %s173
      %p179 = scmp.eq.s32.totalorder %s24, 0
      %p180 = por %p178, %p179
      %p181 = scmp.ne.s32.totalorder %s170, %s173
      %p182 = scmp.eq.s32.totalorder %s29, 1
      %p183 = por %p181, %p182
      %p184 = scmp.ne.s32.totalorder %s173, %s174
      %p185 = scmp.eq.s32.totalorder %s29, 0
      %p186 = por %p184, %p185
      %p187 = scmp.ne.s32.totalorder %s173, %s174
      %p188 = scmp.eq.s32.totalorder %s30, 1
      %p189 = por %p187, %p188
      %p191 = scmp.ne.s32.totalorder %s174, %s190
      %p192 = scmp.eq.s32.totalorder %s30, 0
      %p193 = por %p191, %p192
      %s194 = ssub.s32 %s24, %s31
      %p195 = scmp.eq.s32.totalorder %s194, 0
      %s197 = sadd.s32 %s196, 1
      %s198 = scalar_select %p195, %s196, %s197
      %p201 = pneg %p195
      %p202 = scmp.eq.s32.totalorder %s24, 1
      %p203 = por %p201, %p202
      %p204 = scmp.ne.s32.totalorder %s196, %s199
      %p205 = scmp.eq.s32.totalorder %s24, 0
      %p206 = por %p204, %p205
      %p207 = scmp.ne.s32.totalorder %s196, %s199
      %p208 = scmp.eq.s32.totalorder %s29, 1
      %p209 = por %p207, %p208
      %p210 = scmp.ne.s32.totalorder %s199, %s200
      %p211 = scmp.eq.s32.totalorder %s29, 0
      %p212 = por %p210, %p211
      %p213 = scmp.ne.s32.totalorder %s199, %s200
      %p214 = scmp.eq.s32.totalorder %s30, 1
      %p215 = por %p213, %p214
      %p217 = scmp.ne.s32.totalorder %s200, %s216
      %p218 = scmp.eq.s32.totalorder %s30, 0
      %p219 = por %p217, %p218
      %p220 = scmp.le.s32.totalorder 1, %s24
      %p221 = scmp.lt.s32.totalorder %s24, 3
      %p222 = pnand %p220, %p221
      %p223 = pneg %p222
      // Predicated region
      $region9: #{tpu_custom_call.1} parent=5 // pred_check
        _
      $region10: #{tpu_custom_call.1} parent=5 // pred_check_branch
        %225 = sbr.rel (%p222) target = $region12
      $region11: #{tpu_custom_call.1} parent=5 // pred_region
        %s226 = ssub.s32 %s24, 1
        // Predicated region
        $region13: #{tpu_custom_call.1} parent=11 // pred_check
          %p227 = pneg %p71
        $region14: #{tpu_custom_call.1} parent=11 // pred_check_branch
          %229 = sbr.rel (%p227) target = $region16
        $region15: #{tpu_custom_call.1} parent=11 // pred_region
          %s231 = ssub.s32 4096, 4096
          %232 = vsyncadd [#allocation6], %s231
          %s233 = sshll.u32 [#allocation5], 4
          %s234 = int_to_ptr.vmem [resolvable:$true] %s233
          %239 = dma.hbm_to_vmem [thread:$0]  %s1, 4096, %s234, [#allocation6], 1024, 1024, 64
        $region16: #{tpu_custom_call.1} parent=11 // pred_fallthru
          _
        // Predicated region
        $region17: #{tpu_custom_call.1} parent=11 // pred_check
          %p240 = pneg %p92
        $region18: #{tpu_custom_call.1} parent=11 // pred_check_branch
          %242 = sbr.rel (%p240) target = $region20
        $region19: #{tpu_custom_call.1} parent=11 // pred_region
          %s244 = ssub.s32 128, 128
          %245 = vsyncadd [#allocation6], %s244
          %s247 = sshll.u32 [#allocation7], 4
          %s248 = int_to_ptr.vmem [resolvable:$true] %s247
          %250 = dma.hbm_to_vmem [thread:$0]  %s2, 128, %s248, [#allocation6]
        $region20: #{tpu_custom_call.1} parent=11 // pred_fallthru
          _
        // Predicated region
        $region21: #{tpu_custom_call.1} parent=11 // pred_check
          %p251 = pneg %p113
        $region22: #{tpu_custom_call.1} parent=11 // pred_check_branch
          %253 = sbr.rel (%p251) target = $region24
        $region23: #{tpu_custom_call.1} parent=11 // pred_region
          %s255 = ssub.s32 256, 256
          %256 = vsyncadd [#allocation9], %s255
          %s257 = sshll.u32 [#allocation8], 4
          %s258 = int_to_ptr.vmem [resolvable:$true] %s257
          %263 = dma.hbm_to_vmem [thread:$0]  %s3, 256, %s258, [#allocation9], 128, 128, 8
        $region24: #{tpu_custom_call.1} parent=11 // pred_fallthru
          _
        // Predicated region
        $region25: #{tpu_custom_call.1} parent=11 // pred_check
          %p264 = pneg %p134
        $region26: #{tpu_custom_call.1} parent=11 // pred_check_branch
          %266 = sbr.rel (%p264) target = $region28
        $region27: #{tpu_custom_call.1} parent=11 // pred_region
          %s268 = ssub.s32 256, 256
          %269 = vsyncadd [#allocation9], %s268
          %s270 = sshll.u32 [#allocation10], 4
          %s271 = int_to_ptr.vmem [resolvable:$true] %s270
          %276 = dma.hbm_to_vmem [thread:$0]  %s4, 256, %s271, [#allocation9], 128, 128, 8
        $region28: #{tpu_custom_call.1} parent=11 // pred_fallthru
          _
      $region12: #{tpu_custom_call.1} parent=5 // pred_fallthru
        _
      %p277 = scmp.lt.s32.totalorder %s24, 2
      // Predicated region
      $region29: #{tpu_custom_call.1} parent=5 // pred_check
        %p278 = pneg %p277
      $region30: #{tpu_custom_call.1} parent=5 // pred_check_branch
        %280 = sbr.rel (%p278) target = $region32
      $region31: #{tpu_custom_call.1} parent=5 // pred_region
        // Predicated region
        $region33: #{tpu_custom_call.1} parent=31 // pred_check
          %p281 = pneg %p44
        $region34: #{tpu_custom_call.1} parent=31 // pred_check_branch
          %283 = sbr.rel (%p281) target = $region36
        $region35: #{tpu_custom_call.1} parent=31 // pred_region
          %s284 = sand.u32 %s34, 1
          %s285 = scalar_lea.sflag [#allocation3], %s284
          %s286 = sand.u32 %s34, 1
          %s287 = smul.addr %s286, 16
          %s288 = scalar_lea.vmem [#allocation2], %s287
          %s290 = ssub.s32 256, 256
          %291 = vsyncadd %s285, %s290
          %s292 = smul.addr %s24, 2
          %s293 = smul.addr %s292, 128
          %s294 = scalar_lea.hbm %s0, %s293
          %s295 = sshll.u32 %s288, 4
          %s296 = int_to_ptr.vmem [resolvable:$true] %s295
          %301 = dma.hbm_to_vmem [thread:$0]  %s294, 256, %s296, %s285, 128, 128, 8
        $region36: #{tpu_custom_call.1} parent=31 // pred_fallthru
          _
        // Predicated region
        $region37: #{tpu_custom_call.1} parent=31 // pred_check
          %p302 = pneg %p154
        $region38: #{tpu_custom_call.1} parent=31 // pred_check_branch
          %304 = sbr.rel (%p302) target = $region40
        $region39: #{tpu_custom_call.1} parent=31 // pred_region
          %s305 = sand.u32 %s24, 1
          %s306 = scalar_lea.sflag [#allocation12], %s305
          %s307 = sand.u32 %s144, 1
          %s308 = scalar_lea.vmem [#allocation11], %s307
          %s310 = ssub.s32 16, 16
          %311 = vsyncadd %s306, %s310
          %s312 = smul.addr %s24, 16
          %s313 = scalar_lea.hbm %s5, %s312
          %s315 = sshll.u32 %s308, 4
          %s316 = int_to_ptr.vmem [resolvable:$true] %s315
          %318 = dma.hbm_to_vmem [thread:$0]  %s313, 16, %s316, %s306
        $region40: #{tpu_custom_call.1} parent=31 // pred_fallthru
          _
        // Predicated region
        $region41: #{tpu_custom_call.1} parent=31 // pred_check
          %p319 = pneg %p180
        $region42: #{tpu_custom_call.1} parent=31 // pred_check_branch
          %321 = sbr.rel (%p319) target = $region44
        $region43: #{tpu_custom_call.1} parent=31 // pred_region
          %s322 = sand.u32 %s24, 1
          %s323 = scalar_lea.sflag [#allocation12], %s322
          %s324 = sand.u32 %s170, 1
          %s325 = smul.addr %s324, 16
          %s326 = scalar_lea.vmem [#allocation13], %s325
          %s328 = ssub.s32 256, 256
          %329 = vsyncadd %s323, %s328
          %s330 = smul.addr %s24, 2
          %s331 = smul.addr %s330, 128
          %s332 = scalar_lea.hbm %s6, %s331
          %s333 = sshll.u32 %s326, 4
          %s334 = int_to_ptr.vmem [resolvable:$true] %s333
          %339 = dma.hbm_to_vmem [thread:$0]  %s332, 256, %s334, %s323, 128, 128, 8
        $region44: #{tpu_custom_call.1} parent=31 // pred_fallthru
          _
      $region32: #{tpu_custom_call.1} parent=5 // pred_fallthru
        _
      %p340 = scmp.le.s32.totalorder 1, %s24
      %p341 = scmp.lt.s32.totalorder %s24, 3
      %p342 = pnand %p340, %p341
      %p343 = pneg %p342
      // Predicated region
      $region45: #{tpu_custom_call.1} parent=5 // pred_check
        _
      $region46: #{tpu_custom_call.1} parent=5 // pred_check_branch
        %345 = sbr.rel (%p342) target = $region48
      $region47: #{tpu_custom_call.1} parent=5 // pred_region
        %s346 = ssub.s32 %s24, 1
        %s347 = sand.u32 %s37, 1
        %s348 = scalar_lea.sflag [#allocation3], %s347
        %s349 = sand.u32 %s37, 1
        %s350 = smul.addr %s349, 16
        %s351 = scalar_lea.vmem [#allocation2], %s350
        // Predicated region
        $region49: #{tpu_custom_call.1} parent=47 // pred_check
          %p352 = pneg %p50
        $region50: #{tpu_custom_call.1} parent=47 // pred_check_branch
          %354 = sbr.rel (%p352) target = $region52
        $region51: #{tpu_custom_call.1} parent=47 // pred_region
          %355 = dma.done %s348, 256
        $region52: #{tpu_custom_call.1} parent=47 // pred_fallthru
          _
        // Predicated region
        $region53: #{tpu_custom_call.1} parent=47 // pred_check
          %p356 = pneg %p71
        $region54: #{tpu_custom_call.1} parent=47 // pred_check_branch
          %358 = sbr.rel (%p356) target = $region56
        $region55: #{tpu_custom_call.1} parent=47 // pred_region
          %359 = dma.done [#allocation6], 4096
        $region56: #{tpu_custom_call.1} parent=47 // pred_fallthru
          _
        // Predicated region
        $region57: #{tpu_custom_call.1} parent=47 // pred_check
          %p360 = pneg %p92
        $region58: #{tpu_custom_call.1} parent=47 // pred_check_branch
          %362 = sbr.rel (%p360) target = $region60
        $region59: #{tpu_custom_call.1} parent=47 // pred_region
          %363 = dma.done [#allocation6], 128
        $region60: #{tpu_custom_call.1} parent=47 // pred_fallthru
          _
        // Predicated region
        $region61: #{tpu_custom_call.1} parent=47 // pred_check
          %p364 = pneg %p113
        $region62: #{tpu_custom_call.1} parent=47 // pred_check_branch
          %366 = sbr.rel (%p364) target = $region64
        $region63: #{tpu_custom_call.1} parent=47 // pred_region
          %367 = dma.done [#allocation9], 256
        $region64: #{tpu_custom_call.1} parent=47 // pred_fallthru
          _
        // Predicated region
        $region65: #{tpu_custom_call.1} parent=47 // pred_check
          %p368 = pneg %p134
        $region66: #{tpu_custom_call.1} parent=47 // pred_check_branch
          %370 = sbr.rel (%p368) target = $region68
        $region67: #{tpu_custom_call.1} parent=47 // pred_region
          %371 = dma.done [#allocation9], 256
        $region68: #{tpu_custom_call.1} parent=47 // pred_fallthru
          _
        %s372 = sand.u32 %s29, 1
        %s373 = scalar_lea.sflag [#allocation12], %s372
        %s374 = sand.u32 %s147, 1
        %s375 = scalar_lea.vmem [#allocation11], %s374
        // Predicated region
        $region69: #{tpu_custom_call.1} parent=47 // pred_check
          %p376 = pneg %p160
        $region70: #{tpu_custom_call.1} parent=47 // pred_check_branch
          %378 = sbr.rel (%p376) target = $region72
        $region71: #{tpu_custom_call.1} parent=47 // pred_region
          %379 = dma.done %s373, 16
        $region72: #{tpu_custom_call.1} parent=47 // pred_fallthru
          _
        %s380 = sand.u32 %s29, 1
        %s381 = scalar_lea.sflag [#allocation12], %s380
        %s382 = sand.u32 %s173, 1
        %s383 = smul.addr %s382, 16
        %s384 = scalar_lea.vmem [#allocation13], %s383
        // Predicated region
        $region73: #{tpu_custom_call.1} parent=47 // pred_check
          %p385 = pneg %p186
        $region74: #{tpu_custom_call.1} parent=47 // pred_check_branch
          %387 = sbr.rel (%p385) target = $region76
        $region75: #{tpu_custom_call.1} parent=47 // pred_region
          %388 = dma.done %s381, 256
        $region76: #{tpu_custom_call.1} parent=47 // pred_fallthru
          _
        %s389 = sand.u32 %s37, 1
        %s390 = scalar_lea.sflag [#allocation3], %s389
        %s391 = sand.u32 %s37, 1
        %s392 = smul.addr %s391, 16
        %s393 = scalar_lea.vmem [#allocation2], %s392
        %p394 = pneg %p50
        %p395 = pneg %p47
        %p396 = pneg %p71
        %p397 = pneg %p68
        %p398 = pneg %p92
        %p399 = pneg %p89
        %p400 = pneg %p113
        %p401 = pneg %p110
        %p402 = pneg %p134
        %p403 = pneg %p131
        %s404 = sand.u32 %s29, 1
        %s405 = scalar_lea.sflag [#allocation12], %s404
        %s406 = sand.u32 %s147, 1
        %s407 = scalar_lea.vmem [#allocation11], %s406
        %p408 = pneg %p160
        %p409 = pneg %p157
        %s410 = sand.u32 %s29, 1
        %s411 = scalar_lea.sflag [#allocation12], %s410
        %s412 = sand.u32 %s173, 1
        %s413 = smul.addr %s412, 16
        %s414 = scalar_lea.vmem [#allocation13], %s413
        %p415 = pneg %p186
        %p416 = pneg %p183
        %p417 = pneg %p212
        %p418 = pneg %p209
        %s419 = sand.u32 %s199, 1
        %s420 = scalar_lea.sflag [#allocation4], %s419
        %s421 = sand.u32 %s199, 1
        %s422 = smul.addr %s421, 32
        %s423 = scalar_lea.vmem [#allocation14], %s422
        %v424 = vld [vmem:[%s351] sm:$0xff]
        %v425 = vld [vmem:[%s351 + $0x8] sm:$0xff]
        %v426 = vld [vmem:[#allocation5] sm:$0xff]
        %v427 = vld [vmem:[#allocation5 + $0x8] sm:$0xff]
        %v428 = vld [vmem:[#allocation5 + $0x10] sm:$0xff]
        %v429 = vld [vmem:[#allocation5 + $0x18] sm:$0xff]
        %v430 = vld [vmem:[#allocation5 + $0x20] sm:$0xff]
        %v431 = vld [vmem:[#allocation5 + $0x28] sm:$0xff]
        %v432 = vld [vmem:[#allocation5 + $0x30] sm:$0xff]
        %v433 = vld [vmem:[#allocation5 + $0x38] sm:$0xff]
        %v434 = vld [vmem:[#allocation5 + $0x40] sm:$0xff]
        %v435 = vld [vmem:[#allocation5 + $0x48] sm:$0xff]
        %v436 = vld [vmem:[#allocation5 + $0x50] sm:$0xff]
        %v437 = vld [vmem:[#allocation5 + $0x58] sm:$0xff]
        %v438 = vld [vmem:[#allocation5 + $0x60] sm:$0xff]
        %v439 = vld [vmem:[#allocation5 + $0x68] sm:$0xff]
        %v440 = vld [vmem:[#allocation5 + $0x70] sm:$0xff]
        %v441 = vld [vmem:[#allocation5 + $0x78] sm:$0xff]
        %v442 = vld [vmem:[#allocation5 + $0x80] sm:$0xff]
        %v443 = vld [vmem:[#allocation5 + $0x88] sm:$0xff]
        %v444 = vld [vmem:[#allocation5 + $0x90] sm:$0xff]
        %v445 = vld [vmem:[#allocation5 + $0x98] sm:$0xff]
        %v446 = vld [vmem:[#allocation5 + $0xa0] sm:$0xff]
        %v447 = vld [vmem:[#allocation5 + $0xa8] sm:$0xff]
        %v448 = vld [vmem:[#allocation5 + $0xb0] sm:$0xff]
        %v449 = vld [vmem:[#allocation5 + $0xb8] sm:$0xff]
        %v450 = vld [vmem:[#allocation5 + $0xc0] sm:$0xff]
        %v451 = vld [vmem:[#allocation5 + $0xc8] sm:$0xff]
        %v452 = vld [vmem:[#allocation5 + $0xd0] sm:$0xff]
        %v453 = vld [vmem:[#allocation5 + $0xd8] sm:$0xff]
        %v454 = vld [vmem:[#allocation5 + $0xe0] sm:$0xff]
        %v455 = vld [vmem:[#allocation5 + $0xe8] sm:$0xff]
        %v456 = vld [vmem:[#allocation5 + $0xf0] sm:$0xff]
        %v457 = vld [vmem:[#allocation5 + $0xf8] sm:$0xff]
        %v458 = vld [vmem:[#allocation7] sm:$0xff]
        %v460 = vlaneseq
        %v461 = vshrl.u32 %v460, 7
        %v462 = vsub.s32 0, %v461
        %v463 = vrot.slane %v458, %v462
        %v464 = vlaneseq
        %v465 = vshrl.u32 %v464, 7
        %v466 = vsub.s32 1, %v465
        %v467 = vrot.slane %v458, %v466
        %v468 = vlaneseq
        %v469 = vshrl.u32 %v468, 7
        %v470 = vsub.s32 2, %v469
        %v471 = vrot.slane %v458, %v470
        %v472 = vlaneseq
        %v473 = vshrl.u32 %v472, 7
        %v474 = vsub.s32 3, %v473
        %v475 = vrot.slane %v458, %v474
        %v476 = vlaneseq
        %v477 = vshrl.u32 %v476, 7
        %v478 = vsub.s32 4, %v477
        %v479 = vrot.slane %v458, %v478
        %v480 = vlaneseq
        %v481 = vshrl.u32 %v480, 7
        %v482 = vsub.s32 5, %v481
        %v483 = vrot.slane %v458, %v482
        %v484 = vlaneseq
        %v485 = vshrl.u32 %v484, 7
        %v486 = vsub.s32 6, %v485
        %v487 = vrot.slane %v458, %v486
        %v488 = vlaneseq
        %v489 = vshrl.u32 %v488, 7
        %v490 = vsub.s32 7, %v489
        %v491 = vrot.slane %v458, %v490
        %vm500 = vcmask 261120
        %v502 = vsel %vm500, %v424, 0
        %v505 = vsel %vm500, %v425, 0
        %507 = vmatprep.subr.mxu0 %v427
        %508 = vmatpush1.msra.mxu0 %v426
        %509 = vmatprep.subr.mxu0 %v435
        %510 = vmatpush1.msra.mxu0 %v434
        %511 = vmatprep.subr.mxu0 %v443
        %512 = vmatpush1.msra.mxu0 %v442
        %513 = vmatprep.subr.mxu0 %v451
        %514 = vmatpush1.msra.mxu0 %v450
        %515 = vmatprep.subr.mxu0 0.0
        %516 = vmatpush1.msra.mxu0 0.0
        %517 = vmatprep.subr.mxu0 0.0
        %518 = vmatpush1.msra.mxu0 0.0
        %519 = vmatprep.subr.mxu0 0.0
        %520 = vmatpush1.msra.mxu0 0.0
        %521 = vmatprep.subr.mxu0 0.0
        %522 = vmatpush1.msra.mxu0 0.0
        %523 = vmatprep.subr.mxu0 0.0
        %524 = vmatpush1.msra.mxu0 0.0
        %525 = vmatprep.subr.mxu0 0.0
        %526 = vmatpush1.msra.mxu0 0.0
        %527 = vmatprep.subr.mxu0 0.0
        %528 = vmatpush1.msra.mxu0 0.0
        %529 = vmatprep.subr.mxu0 0.0
        %530 = vmatpush1.msra.mxu0 0.0
        %531 = vmatprep.subr.mxu0 0.0
        %532 = vmatpush1.msra.mxu0 0.0
        %533 = vmatprep.subr.mxu0 0.0
        %534 = vmatpush1.msra.mxu0 0.0
        %535 = vmatprep.subr.mxu0 0.0
        %536 = vmatpush1.msra.mxu0 0.0
        %537 = vmatprep.subr.mxu0 0.0
        %538 = vmatpush1.msra.mxu0 0.0
        %539 = vmatprep.subr.mxu0 0.0
        %540 = vmatpush1.msra.mxu0 0.0
        %541 = vmatprep.subr.mxu0 0.0
        %542 = vmatpush1.msra.mxu0 0.0
        %543 = vmatprep.subr.mxu0 0.0
        %544 = vmatpush1.msra.mxu0 0.0
        %545 = vmatprep.subr.mxu0 0.0
        %546 = vmatpush1.msra.mxu0 0.0
        %547 = vmatprep.subr.mxu0 0.0
        %548 = vmatpush1.msra.mxu0 0.0
        %549 = vmatprep.subr.mxu0 0.0
        %550 = vmatpush1.msra.mxu0 0.0
        %551 = vmatprep.subr.mxu0 0.0
        %552 = vmatpush1.msra.mxu0 0.0
        %553 = vmatprep.subr.mxu0 0.0
        %554 = vmatpush1.msra.mxu0 0.0
        %555 = vmatprep.subr.mxu0 0.0
        %556 = vmatpush1.msra.mxu0 0.0
        %557 = vmatprep.subr.mxu0 0.0
        %558 = vmatpush1.msra.mxu0 0.0
        %559 = vmatprep.subr.mxu0 0.0
        %560 = vmatpush1.msra.mxu0 0.0
        %561 = vmatprep.subr.mxu0 0.0
        %562 = vmatpush1.msra.mxu0 0.0
        %563 = vmatprep.subr.mxu0 0.0
        %564 = vmatpush1.msra.mxu0 0.0
        %565 = vmatprep.subr.mxu0 0.0
        %566 = vmatpush1.msra.mxu0 0.0
        %567 = vmatprep.subr.mxu0 0.0
        %568 = vmatpush1.msra.mxu0 0.0
        %569 = vmatprep.subr.mxu0 0.0
        %570 = vmatpush1.msra.mxu0 0.0
        %571 = vmatprep.mubr.f32.mxu0 0.0
        %572 = vmatmul.mubr.f32.gmra.mrb[0].mxu0 %v502
        %v573 = vpop.f32.mrb[0].mxu0
        %v574 = vadd.f32 %v463, %v573
        %v575 = vpop.f32.mrb[0].mxu0
        %v576 = vadd.f32 %v467, %v575
        %577 = vmatprep.mubr.f32.mxu0 0.0
        %578 = vmatmul.mubr.f32.gmra.mrb[0].mxu0 %v505
        %v579 = vpop.f32.mrb[0].mxu0
        %v580 = vadd.f32 %v463, %v579
        %v581 = vpop.f32.mrb[0].mxu0
        %v582 = vadd.f32 %v467, %v581
        %583 = vdwg.mxu0
        %584 = vmatprep.subr.mxu0 %v429
        %585 = vmatpush1.msra.mxu0 %v428
        %586 = vmatprep.subr.mxu0 %v437
        %587 = vmatpush1.msra.mxu0 %v436
        %588 = vmatprep.subr.mxu0 %v445
        %589 = vmatpush1.msra.mxu0 %v444
        %590 = vmatprep.subr.mxu0 %v453
        %591 = vmatpush1.msra.mxu0 %v452
        %592 = vmatprep.subr.mxu0 0.0
        %593 = vmatpush1.msra.mxu0 0.0
        %594 = vmatprep.subr.mxu0 0.0
        %595 = vmatpush1.msra.mxu0 0.0
        %596 = vmatprep.subr.mxu0 0.0
        %597 = vmatpush1.msra.mxu0 0.0
        %598 = vmatprep.subr.mxu0 0.0
        %599 = vmatpush1.msra.mxu0 0.0
        %600 = vmatprep.subr.mxu0 0.0
        %601 = vmatpush1.msra.mxu0 0.0
        %602 = vmatprep.subr.mxu0 0.0
        %603 = vmatpush1.msra.mxu0 0.0
        %604 = vmatprep.subr.mxu0 0.0
        %605 = vmatpush1.msra.mxu0 0.0
        %606 = vmatprep.subr.mxu0 0.0
        %607 = vmatpush1.msra.mxu0 0.0
        %608 = vmatprep.subr.mxu0 0.0
        %609 = vmatpush1.msra.mxu0 0.0
        %610 = vmatprep.subr.mxu0 0.0
        %611 = vmatpush1.msra.mxu0 0.0
        %612 = vmatprep.subr.mxu0 0.0
        %613 = vmatpush1.msra.mxu0 0.0
        %614 = vmatprep.subr.mxu0 0.0
        %615 = vmatpush1.msra.mxu0 0.0
        %616 = vmatprep.subr.mxu0 0.0
        %617 = vmatpush1.msra.mxu0 0.0
        %618 = vmatprep.subr.mxu0 0.0
        %619 = vmatpush1.msra.mxu0 0.0
        %620 = vmatprep.subr.mxu0 0.0
        %621 = vmatpush1.msra.mxu0 0.0
        %622 = vmatprep.subr.mxu0 0.0
        %623 = vmatpush1.msra.mxu0 0.0
        %624 = vmatprep.subr.mxu0 0.0
        %625 = vmatpush1.msra.mxu0 0.0
        %626 = vmatprep.subr.mxu0 0.0
        %627 = vmatpush1.msra.mxu0 0.0
        %628 = vmatprep.subr.mxu0 0.0
        %629 = vmatpush1.msra.mxu0 0.0
        %630 = vmatprep.subr.mxu0 0.0
        %631 = vmatpush1.msra.mxu0 0.0
        %632 = vmatprep.subr.mxu0 0.0
        %633 = vmatpush1.msra.mxu0 0.0
        %634 = vmatprep.subr.mxu0 0.0
        %635 = vmatpush1.msra.mxu0 0.0
        %636 = vmatprep.subr.mxu0 0.0
        %637 = vmatpush1.msra.mxu0 0.0
        %638 = vmatprep.subr.mxu0 0.0
        %639 = vmatpush1.msra.mxu0 0.0
        %640 = vmatprep.subr.mxu0 0.0
        %641 = vmatpush1.msra.mxu0 0.0
        %642 = vmatprep.subr.mxu0 0.0
        %643 = vmatpush1.msra.mxu0 0.0
        %644 = vmatprep.subr.mxu0 0.0
        %645 = vmatpush1.msra.mxu0 0.0
        %646 = vmatprep.subr.mxu0 0.0
        %647 = vmatpush1.msra.mxu0 0.0
        %648 = vmatprep.mubr.f32.mxu0 0.0
        %649 = vmatmul.mubr.f32.gmra.mrb[0].mxu0 %v502
        %v650 = vpop.f32.mrb[0].mxu0
        %v651 = vadd.f32 %v471, %v650
        %v652 = vpop.f32.mrb[0].mxu0
        %v653 = vadd.f32 %v475, %v652
        %654 = vmatprep.mubr.f32.mxu0 0.0
        %655 = vmatmul.mubr.f32.gmra.mrb[0].mxu0 %v505
        %v656 = vpop.f32.mrb[0].mxu0
        %v657 = vadd.f32 %v471, %v656
        %v658 = vpop.f32.mrb[0].mxu0
        %v659 = vadd.f32 %v475, %v658
        %660 = vdwg.mxu0
        %661 = vmatprep.subr.mxu0 %v431
        %662 = vmatpush1.msra.mxu0 %v430
        %663 = vmatprep.subr.mxu0 %v439
        %664 = vmatpush1.msra.mxu0 %v438
        %665 = vmatprep.subr.mxu0 %v447
        %666 = vmatpush1.msra.mxu0 %v446
        %667 = vmatprep.subr.mxu0 %v455
        %668 = vmatpush1.msra.mxu0 %v454
        %669 = vmatprep.subr.mxu0 0.0
        %670 = vmatpush1.msra.mxu0 0.0
        %671 = vmatprep.subr.mxu0 0.0
        %672 = vmatpush1.msra.mxu0 0.0
        %673 = vmatprep.subr.mxu0 0.0
        %674 = vmatpush1.msra.mxu0 0.0
        %675 = vmatprep.subr.mxu0 0.0
        %676 = vmatpush1.msra.mxu0 0.0
        %677 = vmatprep.subr.mxu0 0.0
        %678 = vmatpush1.msra.mxu0 0.0
        %679 = vmatprep.subr.mxu0 0.0
        %680 = vmatpush1.msra.mxu0 0.0
        %681 = vmatprep.subr.mxu0 0.0
        %682 = vmatpush1.msra.mxu0 0.0
        %683 = vmatprep.subr.mxu0 0.0
        %684 = vmatpush1.msra.mxu0 0.0
        %685 = vmatprep.subr.mxu0 0.0
        %686 = vmatpush1.msra.mxu0 0.0
        %687 = vmatprep.subr.mxu0 0.0
        %688 = vmatpush1.msra.mxu0 0.0
        %689 = vmatprep.subr.mxu0 0.0
        %690 = vmatpush1.msra.mxu0 0.0
        %691 = vmatprep.subr.mxu0 0.0
        %692 = vmatpush1.msra.mxu0 0.0
        %693 = vmatprep.subr.mxu0 0.0
        %694 = vmatpush1.msra.mxu0 0.0
        %695 = vmatprep.subr.mxu0 0.0
        %696 = vmatpush1.msra.mxu0 0.0
        %697 = vmatprep.subr.mxu0 0.0
        %698 = vmatpush1.msra.mxu0 0.0
        %699 = vmatprep.subr.mxu0 0.0
        %700 = vmatpush1.msra.mxu0 0.0
        %701 = vmatprep.subr.mxu0 0.0
        %702 = vmatpush1.msra.mxu0 0.0
        %703 = vmatprep.subr.mxu0 0.0
        %704 = vmatpush1.msra.mxu0 0.0
        %705 = vmatprep.subr.mxu0 0.0
        %706 = vmatpush1.msra.mxu0 0.0
        %707 = vmatprep.subr.mxu0 0.0
        %708 = vmatpush1.msra.mxu0 0.0
        %709 = vmatprep.subr.mxu0 0.0
        %710 = vmatpush1.msra.mxu0 0.0
        %711 = vmatprep.subr.mxu0 0.0
        %712 = vmatpush1.msra.mxu0 0.0
        %713 = vmatprep.subr.mxu0 0.0
        %714 = vmatpush1.msra.mxu0 0.0
        %715 = vmatprep.subr.mxu0 0.0
        %716 = vmatpush1.msra.mxu0 0.0
        %717 = vmatprep.subr.mxu0 0.0
        %718 = vmatpush1.msra.mxu0 0.0
        %719 = vmatprep.subr.mxu0 0.0
        %720 = vmatpush1.msra.mxu0 0.0
        %721 = vmatprep.subr.mxu0 0.0
        %722 = vmatpush1.msra.mxu0 0.0
        %723 = vmatprep.subr.mxu0 0.0
        %724 = vmatpush1.msra.mxu0 0.0
        %725 = vmatprep.mubr.f32.mxu0 0.0
        %726 = vmatmul.mubr.f32.gmra.mrb[0].mxu0 %v502
        %v727 = vpop.f32.mrb[0].mxu0
        %v728 = vadd.f32 %v479, %v727
        %v729 = vpop.f32.mrb[0].mxu0
        %v730 = vadd.f32 %v483, %v729
        %731 = vmatprep.mubr.f32.mxu0 0.0
        %732 = vmatmul.mubr.f32.gmra.mrb[0].mxu0 %v505
        %v733 = vpop.f32.mrb[0].mxu0
        %v734 = vadd.f32 %v479, %v733
        %v735 = vpop.f32.mrb[0].mxu0
        %v736 = vadd.f32 %v483, %v735
        %737 = vdwg.mxu0
        %738 = vmatprep.subr.mxu0 %v433
        %739 = vmatpush1.msra.mxu0 %v432
        %740 = vmatprep.subr.mxu0 %v441
        %741 = vmatpush1.msra.mxu0 %v440
        %742 = vmatprep.subr.mxu0 %v449
        %743 = vmatpush1.msra.mxu0 %v448
        %744 = vmatprep.subr.mxu0 %v457
        %745 = vmatpush1.msra.mxu0 %v456
        %746 = vmatprep.subr.mxu0 0.0
        %747 = vmatpush1.msra.mxu0 0.0
        %748 = vmatprep.subr.mxu0 0.0
        %749 = vmatpush1.msra.mxu0 0.0
        %750 = vmatprep.subr.mxu0 0.0
        %751 = vmatpush1.msra.mxu0 0.0
        %752 = vmatprep.subr.mxu0 0.0
        %753 = vmatpush1.msra.mxu0 0.0
        %754 = vmatprep.subr.mxu0 0.0
        %755 = vmatpush1.msra.mxu0 0.0
        %756 = vmatprep.subr.mxu0 0.0
        %757 = vmatpush1.msra.mxu0 0.0
        %758 = vmatprep.subr.mxu0 0.0
        %759 = vmatpush1.msra.mxu0 0.0
        %760 = vmatprep.subr.mxu0 0.0
        %761 = vmatpush1.msra.mxu0 0.0
        %762 = vmatprep.subr.mxu0 0.0
        %763 = vmatpush1.msra.mxu0 0.0
        %764 = vmatprep.subr.mxu0 0.0
        %765 = vmatpush1.msra.mxu0 0.0
        %766 = vmatprep.subr.mxu0 0.0
        %767 = vmatpush1.msra.mxu0 0.0
        %768 = vmatprep.subr.mxu0 0.0
        %769 = vmatpush1.msra.mxu0 0.0
        %770 = vmatprep.subr.mxu0 0.0
        %771 = vmatpush1.msra.mxu0 0.0
        %772 = vmatprep.subr.mxu0 0.0
        %773 = vmatpush1.msra.mxu0 0.0
        %774 = vmatprep.subr.mxu0 0.0
        %775 = vmatpush1.msra.mxu0 0.0
        %776 = vmatprep.subr.mxu0 0.0
        %777 = vmatpush1.msra.mxu0 0.0
        %778 = vmatprep.subr.mxu0 0.0
        %779 = vmatpush1.msra.mxu0 0.0
        %780 = vmatprep.subr.mxu0 0.0
        %781 = vmatpush1.msra.mxu0 0.0
        %782 = vmatprep.subr.mxu0 0.0
        %783 = vmatpush1.msra.mxu0 0.0
        %784 = vmatprep.subr.mxu0 0.0
        %785 = vmatpush1.msra.mxu0 0.0
        %786 = vmatprep.subr.mxu0 0.0
        %787 = vmatpush1.msra.mxu0 0.0
        %788 = vmatprep.subr.mxu0 0.0
        %789 = vmatpush1.msra.mxu0 0.0
        %790 = vmatprep.subr.mxu0 0.0
        %791 = vmatpush1.msra.mxu0 0.0
        %792 = vmatprep.subr.mxu0 0.0
        %793 = vmatpush1.msra.mxu0 0.0
        %794 = vmatprep.subr.mxu0 0.0
        %795 = vmatpush1.msra.mxu0 0.0
        %796 = vmatprep.subr.mxu0 0.0
        %797 = vmatpush1.msra.mxu0 0.0
        %798 = vmatprep.subr.mxu0 0.0
        %799 = vmatpush1.msra.mxu0 0.0
        %800 = vmatprep.subr.mxu0 0.0
        %801 = vmatpush1.msra.mxu0 0.0
        %802 = vmatprep.mubr.f32.mxu0 0.0
        %803 = vmatmul.mubr.f32.gmra.mrb[0].mxu0 %v502
        %v804 = vpop.f32.mrb[0].mxu0
        %v805 = vadd.f32 %v487, %v804
        %v806 = vpop.f32.mrb[0].mxu0
        %v807 = vadd.f32 %v491, %v806
        %808 = vmatprep.mubr.f32.mxu0 0.0
        %809 = vmatmul.mubr.f32.gmra.mrb[0].mxu0 %v505
        %v810 = vpop.f32.mrb[0].mxu0
        %v811 = vadd.f32 %v487, %v810
        %v812 = vpop.f32.mrb[0].mxu0
        %v813 = vadd.f32 %v491, %v812
        %814 = vdwg.mxu0
        %v815 = vld [vmem:[#allocation8] sm:$0xff]
        %v816 = vld [vmem:[#allocation8 + $0x8] sm:$0xff]
        %v817 = vld [vmem:[#allocation10] sm:$0xff]
        %v818 = vld [vmem:[#allocation10 + $0x8] sm:$0xff]
        %v819 = vld [vmem:[%s384] sm:$0xff]
        %v820 = vld [vmem:[%s384 + $0x8] sm:$0xff]
        %822 = vset.pattern.permute.xlu0 0
        %823 = vperm.xlu0 %822, %v819
        %v824 = vpop.permute.xlu0 %823
        %827 = vset.pattern.permute.xlu0 0
        %828 = vperm.xlu0 %827, %v820
        %v829 = vpop.permute.xlu0 %828
        %v831 = vmul.f32 %v815, %v824
        %v832 = vmul.f32 %v816, %v829
        %v833 = vmul.f32 %v817, %v824
        %v834 = vmul.f32 %v818, %v829
        %v835 = vlaneseq
        %v836 = vshrl.u32 %v835, 7
        %v837 = vadd.s32 %v836, 8
        %v838 = vlaneseq
        %v839 = vand.u32 %v838, 127
        %vm840 = vcmp.gt.s32.totalorder %v836, %v839
        %vm841 = vcmp.gt.s32.totalorder %v837, %v839
        %v842 = vsel %vm840, 1, 0
        %v843 = vsel %vm841, 1, 0
        %v844 = vcvt.s32.f32 %v842
        %v845 = vcvt.s32.f32 %v843
        %v846 = vld [vmem:[%s375] sm:$0x1]
        %v847 = vsub.f32 1.0, %v846
        %v848 = vsub.f32 0.0, %v847
        %v849 = vmul.f32 %v848, 1e+12
        %v850 = vmul.f32 %v844, 1e+12
        %v851 = vmul.f32 %v845, 1e+12
        %v853 = vlaneseq
        %v854 = vshrl.u32 %v853, 7
        %v855 = vsub.s32 0, %v854
        %v856 = vrot.slane %v849, %v855
        %v858 = vsub.f32 %v856, %v850
        %v859 = vsub.f32 %v856, %v851
        %v860 = vmul.f32 %v858, 0.088388346
        %v861 = vmul.f32 %v859, 0.088388346
        %v862 = vmul.f32 %v574, %v815
        %v863 = vmul.f32 %v580, %v816
        %v864 = vmul.f32 %v728, %v817
        %v865 = vmul.f32 %v734, %v818
        %v866 = vadd.f32 %v862, %v864
        %v867 = vadd.f32 %v863, %v865
        %v868 = vmul.f32 %v576, %v831
        %v869 = vmul.f32 %v582, %v832
        %v870 = vmul.f32 %v730, %v833
        %v871 = vmul.f32 %v736, %v834
        %v872 = vadd.f32 %v868, %v870
        %v873 = vadd.f32 %v869, %v871
        %874 = vmatprep.subr.mxu0 0.0
        %875 = vmatpush1.xpose.msra.mxu0 %v872
        %876 = vmatprep.subr.mxu0 0.0
        %877 = vmatpush1.xpose.msra.mxu0 %v873
        %878 = vmatprep.subr.mxu0 0.0
        %879 = vmatpush1.xpose.msra.mxu0 0.0
        %880 = vmatprep.subr.mxu0 0.0
        %881 = vmatpush1.xpose.msra.mxu0 0.0
        %882 = vmatprep.subr.mxu0 0.0
        %883 = vmatpush1.xpose.msra.mxu0 0.0
        %884 = vmatprep.subr.mxu0 0.0
        %885 = vmatpush1.xpose.msra.mxu0 0.0
        %886 = vmatprep.subr.mxu0 0.0
        %887 = vmatpush1.xpose.msra.mxu0 0.0
        %888 = vmatprep.subr.mxu0 0.0
        %889 = vmatpush1.xpose.msra.mxu0 0.0
        %890 = vmatprep.subr.mxu0 0.0
        %891 = vmatpush1.xpose.msra.mxu0 0.0
        %892 = vmatprep.subr.mxu0 0.0
        %893 = vmatpush1.xpose.msra.mxu0 0.0
        %894 = vmatprep.subr.mxu0 0.0
        %895 = vmatpush1.xpose.msra.mxu0 0.0
        %896 = vmatprep.subr.mxu0 0.0
        %897 = vmatpush1.xpose.msra.mxu0 0.0
        %898 = vmatprep.subr.mxu0 0.0
        %899 = vmatpush1.xpose.msra.mxu0 0.0
        %900 = vmatprep.subr.mxu0 0.0
        %901 = vmatpush1.xpose.msra.mxu0 0.0
        %902 = vmatprep.subr.mxu0 0.0
        %903 = vmatpush1.xpose.msra.mxu0 0.0
        %904 = vmatprep.subr.mxu0 0.0
        %905 = vmatpush1.xpose.msra.mxu0 0.0
        %906 = vmatprep.subr.mxu0 0.0
        %907 = vmatpush1.xpose.msra.mxu0 0.0
        %908 = vmatprep.subr.mxu0 0.0
        %909 = vmatpush1.xpose.msra.mxu0 0.0
        %910 = vmatprep.subr.mxu0 0.0
        %911 = vmatpush1.xpose.msra.mxu0 0.0
        %912 = vmatprep.subr.mxu0 0.0
        %913 = vmatpush1.xpose.msra.mxu0 0.0
        %914 = vmatprep.subr.mxu0 0.0
        %915 = vmatpush1.xpose.msra.mxu0 0.0
        %916 = vmatprep.subr.mxu0 0.0
        %917 = vmatpush1.xpose.msra.mxu0 0.0
        %918 = vmatprep.subr.mxu0 0.0
        %919 = vmatpush1.xpose.msra.mxu0 0.0
        %920 = vmatprep.subr.mxu0 0.0
        %921 = vmatpush1.xpose.msra.mxu0 0.0
        %922 = vmatprep.subr.mxu0 0.0
        %923 = vmatpush1.xpose.msra.mxu0 0.0
        %924 = vmatprep.subr.mxu0 0.0
        %925 = vmatpush1.xpose.msra.mxu0 0.0
        %926 = vmatprep.subr.mxu0 0.0
        %927 = vmatpush1.xpose.msra.mxu0 0.0
        %928 = vmatprep.subr.mxu0 0.0
        %929 = vmatpush1.xpose.msra.mxu0 0.0
        %930 = vmatprep.subr.mxu0 0.0
        %931 = vmatpush1.xpose.msra.mxu0 0.0
        %932 = vmatprep.subr.mxu0 0.0
        %933 = vmatpush1.xpose.msra.mxu0 0.0
        %934 = vmatprep.subr.mxu0 0.0
        %935 = vmatpush1.xpose.msra.mxu0 0.0
        %936 = vmatprep.subr.mxu0 0.0
        %937 = vmatpush1.xpose.msra.mxu0 0.0
        %938 = vmatprep.mubr.f32.mxu0 0.0
        %939 = vmatmul.mubr.f32.gmra.mrb[0].mxu0 %v866
        %v940 = vpop.f32.mrb[0].mxu0
        %v941 = vadd.f32 %v860, %v940
        %v942 = vpop.f32.mrb[0].mxu0
        %943 = vmatprep.mubr.f32.mxu0 0.0
        %944 = vmatmul.mubr.f32.gmra.mrb[0].mxu0 %v867
        %v945 = vpop.f32.mrb[0].mxu0
        %v946 = vadd.f32 %v861, %v945
        %v947 = vpop.f32.mrb[0].mxu0
        %948 = vdwg.mxu0
        %vm949 = vcmask 130048
        %950 = vst.msk [vmem:[%s423] sm:$0xff] %vm949, %v941
        %951 = vst.msk [vmem:[%s423 + $0x8] sm:$0xff] %vm949, %v946
        %v952 = vmul.f32 %v651, %v815
        %v953 = vmul.f32 %v657, %v816
        %v954 = vmul.f32 %v805, %v817
        %v955 = vmul.f32 %v811, %v818
        %v956 = vadd.f32 %v952, %v954
        %v957 = vadd.f32 %v953, %v955
        %v958 = vmul.f32 %v653, %v831
        %v959 = vmul.f32 %v659, %v832
        %v960 = vmul.f32 %v807, %v833
        %v961 = vmul.f32 %v813, %v834
        %v962 = vadd.f32 %v958, %v960
        %v963 = vadd.f32 %v959, %v961
        %964 = vmatprep.subr.mxu0 0.0
        %965 = vmatpush1.xpose.msra.mxu0 %v962
        %966 = vmatprep.subr.mxu0 0.0
        %967 = vmatpush1.xpose.msra.mxu0 %v963
        %968 = vmatprep.subr.mxu0 0.0
        %969 = vmatpush1.xpose.msra.mxu0 0.0
        %970 = vmatprep.subr.mxu0 0.0
        %971 = vmatpush1.xpose.msra.mxu0 0.0
        %972 = vmatprep.subr.mxu0 0.0
        %973 = vmatpush1.xpose.msra.mxu0 0.0
        %974 = vmatprep.subr.mxu0 0.0
        %975 = vmatpush1.xpose.msra.mxu0 0.0
        %976 = vmatprep.subr.mxu0 0.0
        %977 = vmatpush1.xpose.msra.mxu0 0.0
        %978 = vmatprep.subr.mxu0 0.0
        %979 = vmatpush1.xpose.msra.mxu0 0.0
        %980 = vmatprep.subr.mxu0 0.0
        %981 = vmatpush1.xpose.msra.mxu0 0.0
        %982 = vmatprep.subr.mxu0 0.0
        %983 = vmatpush1.xpose.msra.mxu0 0.0
        %984 = vmatprep.subr.mxu0 0.0
        %985 = vmatpush1.xpose.msra.mxu0 0.0
        %986 = vmatprep.subr.mxu0 0.0
        %987 = vmatpush1.xpose.msra.mxu0 0.0
        %988 = vmatprep.subr.mxu0 0.0
        %989 = vmatpush1.xpose.msra.mxu0 0.0
        %990 = vmatprep.subr.mxu0 0.0
        %991 = vmatpush1.xpose.msra.mxu0 0.0
        %992 = vmatprep.subr.mxu0 0.0
        %993 = vmatpush1.xpose.msra.mxu0 0.0
        %994 = vmatprep.subr.mxu0 0.0
        %995 = vmatpush1.xpose.msra.mxu0 0.0
        %996 = vmatprep.subr.mxu0 0.0
        %997 = vmatpush1.xpose.msra.mxu0 0.0
        %998 = vmatprep.subr.mxu0 0.0
        %999 = vmatpush1.xpose.msra.mxu0 0.0
        %1000 = vmatprep.subr.mxu0 0.0
        %1001 = vmatpush1.xpose.msra.mxu0 0.0
        %1002 = vmatprep.subr.mxu0 0.0
        %1003 = vmatpush1.xpose.msra.mxu0 0.0
        %1004 = vmatprep.subr.mxu0 0.0
        %1005 = vmatpush1.xpose.msra.mxu0 0.0
        %1006 = vmatprep.subr.mxu0 0.0
        %1007 = vmatpush1.xpose.msra.mxu0 0.0
        %1008 = vmatprep.subr.mxu0 0.0
        %1009 = vmatpush1.xpose.msra.mxu0 0.0
        %1010 = vmatprep.subr.mxu0 0.0
        %1011 = vmatpush1.xpose.msra.mxu0 0.0
        %1012 = vmatprep.subr.mxu0 0.0
        %1013 = vmatpush1.xpose.msra.mxu0 0.0
        %1014 = vmatprep.subr.mxu0 0.0
        %1015 = vmatpush1.xpose.msra.mxu0 0.0
        %1016 = vmatprep.subr.mxu0 0.0
        %1017 = vmatpush1.xpose.msra.mxu0 0.0
        %1018 = vmatprep.subr.mxu0 0.0
        %1019 = vmatpush1.xpose.msra.mxu0 0.0
        %1020 = vmatprep.subr.mxu0 0.0
        %1021 = vmatpush1.xpose.msra.mxu0 0.0
        %1022 = vmatprep.subr.mxu0 0.0
        %1023 = vmatpush1.xpose.msra.mxu0 0.0
        %1024 = vmatprep.subr.mxu0 0.0
        %1025 = vmatpush1.xpose.msra.mxu0 0.0
        %1026 = vmatprep.subr.mxu0 0.0
        %1027 = vmatpush1.xpose.msra.mxu0 0.0
        %1028 = vmatprep.mubr.f32.mxu0 0.0
        %1029 = vmatmul.mubr.f32.gmra.mrb[0].mxu0 %v956
        %v1030 = vpop.f32.mrb[0].mxu0
        %v1031 = vadd.f32 %v860, %v1030
        %v1032 = vpop.f32.mrb[0].mxu0
        %1033 = vmatprep.mubr.f32.mxu0 0.0
        %1034 = vmatmul.mubr.f32.gmra.mrb[0].mxu0 %v957
        %v1035 = vpop.f32.mrb[0].mxu0
        %v1036 = vadd.f32 %v861, %v1035
        %v1037 = vpop.f32.mrb[0].mxu0
        %1038 = vdwg.mxu0
        %s1039 = scalar_lea.vmem %s423, 16 [#allocation14]
        %1040 = vst.msk [vmem:[%s1039] sm:$0xff] %vm949, %v1031
        %1041 = vst.msk [vmem:[%s1039 + $0x8] sm:$0xff] %vm949, %v1036
        %s1042 = sand.u32 %s199, 1
        %s1043 = scalar_lea.sflag [#allocation4], %s1042
        %s1044 = sand.u32 %s199, 1
        %s1045 = smul.addr %s1044, 32
        %s1046 = scalar_lea.vmem [#allocation14], %s1045
        // Predicated region
        $region77: #{tpu_custom_call.1} parent=47 // pred_check
          %p1047 = pneg %p209
        $region78: #{tpu_custom_call.1} parent=47 // pred_check_branch
          %1049 = sbr.rel (%p1047) target = $region80
        $region79: #{tpu_custom_call.1} parent=47 // pred_region
          %s1051 = ssub.s32 512, 512
          %1052 = vsyncadd %s1043, %s1051
          %s1053 = smul.addr %s29, 4
          %s1054 = smul.addr %s1053, 128
          %s1055 = scalar_lea.hbm %s7, %s1054
          %s1056 = sshll.u32 %s1046, 4
          %s1057 = int_to_ptr.vmem [resolvable:$true] %s1056
          %1062 = dma.vmem_to_hbm [thread:$0]  %s1057, 512, %s1055, %s1043, 128, 128, 8
        $region80: #{tpu_custom_call.1} parent=47 // pred_fallthru
          _
      $region48: #{tpu_custom_call.1} parent=5 // pred_fallthru
        _
      %p1063 = scmp.le.s32.totalorder 2, %s24
      // Predicated region
      $region81: #{tpu_custom_call.1} parent=5 // pred_check
        %p1064 = pneg %p1063
      $region82: #{tpu_custom_call.1} parent=5 // pred_check_branch
        %1066 = sbr.rel (%p1064) target = $region84
      $region83: #{tpu_custom_call.1} parent=5 // pred_region
        %s1067 = ssub.s32 %s24, 2
        // Predicated region
        $region85: #{tpu_custom_call.1} parent=83 // pred_check
          %p1068 = pneg %p215
        $region86: #{tpu_custom_call.1} parent=83 // pred_check_branch
          %1070 = sbr.rel (%p1068) target = $region88
        $region87: #{tpu_custom_call.1} parent=83 // pred_region
          %s1071 = sand.u32 %s200, 1
          %s1072 = scalar_lea.sflag [#allocation4], %s1071
          %s1073 = sand.u32 %s200, 1
          %s1074 = smul.addr %s1073, 32
          %s1075 = scalar_lea.vmem [#allocation14], %s1074
          %1076 = dma.done %s1072, 512
        $region88: #{tpu_custom_call.1} parent=83 // pred_fallthru
          _
      $region84: #{tpu_custom_call.1} parent=5 // pred_fallthru
        _
    $region6: #{tpu_custom_call.1} parent=1 // loop_footer
      %s28 = sadd.s32 1, %s24
    $region7: #{tpu_custom_call.1} parent=1 // loop_footer_branch
      %23 = sbr.rel target = $region3
    $region8: #{tpu_custom_call.1} parent=1 // loop_exit
      _
    %1077 = vsyncpa [#allocation3], 1
    %s1078 = scalar_lea.sflag [#allocation3], 1
    %1079 = vsyncpa %s1078, 1
    %1080 = vsyncpa [#allocation6], 1
    %1081 = vsyncpa [#allocation9], 1
    %1082 = vsyncpa [#allocation12], 1
    %s1083 = scalar_lea.sflag [#allocation12], 1
    %1084 = vsyncpa %s1083, 1
    %1085 = vsyncpa [#allocation4], 1
    %s1086 = scalar_lea.sflag [#allocation4], 1
    %1087 = vsyncpa %s1086, 1

// kernel: tpu_custom_call.1
$region0: #{tpu_custom_call.1}
  #allocation0 [shape = 'u32[]', space=smem, size = 0x4, offset = 0x4, fixed_abs, tag = 'smem constant byte address 0x4 - core index']
  #allocation1 [shape = 'u32[144,128]{1,0:T(1,128)}', space=vmem, size = 0x12000, scoped, tag = 'internal scratch']
  %s0 = inlined_call_operand.hbm [shape: f32[2,16,32], index: 0, kind: input, shape index: {}]
  %s1 = inlined_call_operand.hbm [shape: f32[32,1024], index: 1, kind: input, shape index: {}]
  %s2 = inlined_call_operand.hbm [shape: f32[1,1024], index: 2, kind: input, shape index: {}]
  %s3 = inlined_call_operand.hbm [shape: f32[16,128], index: 3, kind: input, shape index: {}]
  %s4 = inlined_call_operand.hbm [shape: f32[16,128], index: 4, kind: input, shape index: {}]
  %s5 = inlined_call_operand.hbm [shape: f32[2,1,16], index: 5, kind: input, shape index: {}]
  %s6 = inlined_call_operand.hbm [shape: f32[2,16,1], index: 6, kind: input, shape index: {}]
  %s7 = inlined_call_operand.hbm [shape: f32[2,2,16,16], index: 7, kind: output, shape index: {}]
  %s8 = sld [smem:[#allocation0]]
  $region89: #{tpu_custom_call.1} parent=0
    _
  %s10 = ssub.s32 1, %s8
  %s11 = scalar_select 0, %s10, %s8
  $region1: #{tpu_custom_call.1} parent=0
    #allocation2 [shape = 'u8[16384]{0}', space=vmem, size = 0x4000, scoped, tag = 'input window, operand 0']
    #allocation3 [shape = 's32[2]{0}', space=sflag, size = 0x8, scoped, tag = 'scoped memory for tpu_custom_call.1']
    #allocation4 [shape = 's32[2]{0}', space=sflag, size = 0x8, scoped, tag = 'scoped memory for tpu_custom_call.1']
    #allocation5 [shape = 'u8[131072]{0}', space=vmem, size = 0x20000, scoped, tag = 'input window, operand 1, single buffered']
    #allocation6 [shape = 's32[1]{0}', space=sflag, size = 0x4, scoped, tag = 'scoped memory for tpu_custom_call.1']
    #allocation7 [shape = 'u8[4096]{0}', space=vmem, size = 0x1000, scoped, tag = 'input window, operand 2, single buffered']
    #allocation8 [shape = 'u8[8192]{0}', space=vmem, size = 0x2000, scoped, tag = 'input window, operand 3, single buffered']
    #allocation9 [shape = 's32[1]{0}', space=sflag, size = 0x4, scoped, tag = 'scoped memory for tpu_custom_call.1']
    #allocation10 [shape = 'u8[8192]{0}', space=vmem, size = 0x2000, scoped, tag = 'input window, operand 4, single buffered']
    #allocation11 [shape = 'u8[1024]{0}', space=vmem, size = 0x400, scoped, tag = 'input window, operand 5']
    #allocation12 [shape = 's32[2]{0}', space=sflag, size = 0x8, scoped, tag = 'scoped memory for tpu_custom_call.1']
    #allocation13 [shape = 'u8[16384]{0}', space=vmem, size = 0x4000, scoped, tag = 'input window, operand 6']
    #allocation14 [shape = 'u8[32768]{0}', space=vmem, size = 0x8000, scoped, tag = 'output window, operand 0']
    %12 = vsyncpa [#allocation3], 0
    %s13 = scalar_lea.sflag [#allocation3], 1
    %14 = vsyncpa %s13, 0
    %15 = vsyncpa [#allocation6], 0
    %16 = vsyncpa [#allocation9], 0
    %17 = vsyncpa [#allocation12], 0
    %s18 = scalar_lea.sflag [#allocation12], 1
    %19 = vsyncpa %s18, 0
    %20 = vsyncpa [#allocation4], 0
    %s21 = scalar_lea.sflag [#allocation4], 1
    %22 = vsyncpa %s21, 0
    loop: start=0, step=1, limit=4
    $region2: #{tpu_custom_call.1} parent=1 // loop_pre_header
      _
    $region3: #{tpu_custom_call.1} parent=1 // loop_header
      %s24 = sphi 0, %s28
      %p25 = scmp.ge.s32.totalorder %s24, 4
      %s34 = sphi 0, %s36
      %s37 = sphi 0, %s34
      %s38 = sphi 0, %s37
      %s54 = sphi 0, %s38
      %s58 = sphi 0, %s58
      %s60 = sphi 0, %s58
      %s61 = sphi 0, %s60
      %s75 = sphi 0, %s61
      %s79 = sphi 0, %s79
      %s81 = sphi 0, %s79
      %s82 = sphi 0, %s81
      %s96 = sphi 0, %s82
      %s100 = sphi 0, %s100
      %s102 = sphi 0, %s100
      %s103 = sphi 0, %s102
      %s117 = sphi 0, %s103
      %s121 = sphi 0, %s121
      %s123 = sphi 0, %s121
      %s124 = sphi 0, %s123
      %s138 = sphi 0, %s124
      %s144 = sphi 0, %s146
      %s147 = sphi 0, %s144
      %s148 = sphi 0, %s147
      %s164 = sphi 0, %s148
      %s170 = sphi 0, %s172
      %s173 = sphi 0, %s170
      %s174 = sphi 0, %s173
      %s190 = sphi 0, %s174
      %s196 = sphi 0, %s198
      %s199 = sphi 0, %s196
      %s200 = sphi 0, %s199
      %s216 = sphi 0, %s200
    $region4: #{tpu_custom_call.1} parent=1 // loop_header_branch
      %27 = sbr.rel (%p25) target = $region8
    $region5: #{tpu_custom_call.1} parent=1 // loop_body
      %s29 = ssub.s32 %s24, 1
      %s30 = ssub.s32 %s24, 2
      %s31 = sadd.s32 %s24, 1
      %s32 = ssub.s32 %s24, %s31
      %p33 = scmp.eq.s32.totalorder %s32, 0
      %s35 = sadd.s32 %s34, 1
      %s36 = scalar_select %p33, %s34, %s35
      %p39 = pneg %p33
      %p40 = scmp.eq.s32.totalorder %s24, 1
      %p41 = por %p39, %p40
      %p42 = scmp.ne.s32.totalorder %s34, %s37
      %p43 = scmp.eq.s32.totalorder %s24, 0
      %p44 = por %p42, %p43
      %p45 = scmp.ne.s32.totalorder %s34, %s37
      %p46 = scmp.eq.s32.totalorder %s29, 1
      %p47 = por %p45, %p46
      %p48 = scmp.ne.s32.totalorder %s37, %s38
      %p49 = scmp.eq.s32.totalorder %s29, 0
      %p50 = por %p48, %p49
      %p51 = scmp.ne.s32.totalorder %s37, %s38
      %p52 = scmp.eq.s32.totalorder %s30, 1
      %p53 = por %p51, %p52
      %p55 = scmp.ne.s32.totalorder %s38, %s54
      %p56 = scmp.eq.s32.totalorder %s30, 0
      %p57 = por %p55, %p56
      %s59 = sadd.s32 %s58, 1
      %p62 = scmp.eq.s32.totalorder %s24, 1
      %p63 = scmp.ne.s32.totalorder %s58, %s60
      %p64 = scmp.eq.s32.totalorder %s24, 0
      %p65 = por %p63, %p64
      %p66 = scmp.ne.s32.totalorder %s58, %s60
      %p67 = scmp.eq.s32.totalorder %s29, 1
      %p68 = por %p66, %p67
      %p69 = scmp.ne.s32.totalorder %s60, %s61
      %p70 = scmp.eq.s32.totalorder %s29, 0
      %p71 = por %p69, %p70
      %p72 = scmp.ne.s32.totalorder %s60, %s61
      %p73 = scmp.eq.s32.totalorder %s30, 1
      %p74 = por %p72, %p73
      %p76 = scmp.ne.s32.totalorder %s61, %s75
      %p77 = scmp.eq.s32.totalorder %s30, 0
      %p78 = por %p76, %p77
      %s80 = sadd.s32 %s79, 1
      %p83 = scmp.eq.s32.totalorder %s24, 1
      %p84 = scmp.ne.s32.totalorder %s79, %s81
      %p85 = scmp.eq.s32.totalorder %s24, 0
      %p86 = por %p84, %p85
      %p87 = scmp.ne.s32.totalorder %s79, %s81
      %p88 = scmp.eq.s32.totalorder %s29, 1
      %p89 = por %p87, %p88
      %p90 = scmp.ne.s32.totalorder %s81, %s82
      %p91 = scmp.eq.s32.totalorder %s29, 0
      %p92 = por %p90, %p91
      %p93 = scmp.ne.s32.totalorder %s81, %s82
      %p94 = scmp.eq.s32.totalorder %s30, 1
      %p95 = por %p93, %p94
      %p97 = scmp.ne.s32.totalorder %s82, %s96
      %p98 = scmp.eq.s32.totalorder %s30, 0
      %p99 = por %p97, %p98
      %s101 = sadd.s32 %s100, 1
      %p104 = scmp.eq.s32.totalorder %s24, 1
      %p105 = scmp.ne.s32.totalorder %s100, %s102
      %p106 = scmp.eq.s32.totalorder %s24, 0
      %p107 = por %p105, %p106
      %p108 = scmp.ne.s32.totalorder %s100, %s102
      %p109 = scmp.eq.s32.totalorder %s29, 1
      %p110 = por %p108, %p109
      %p111 = scmp.ne.s32.totalorder %s102, %s103
      %p112 = scmp.eq.s32.totalorder %s29, 0
      %p113 = por %p111, %p112
      %p114 = scmp.ne.s32.totalorder %s102, %s103
      %p115 = scmp.eq.s32.totalorder %s30, 1
      %p116 = por %p114, %p115
      %p118 = scmp.ne.s32.totalorder %s103, %s117
      %p119 = scmp.eq.s32.totalorder %s30, 0
      %p120 = por %p118, %p119
      %s122 = sadd.s32 %s121, 1
      %p125 = scmp.eq.s32.totalorder %s24, 1
      %p126 = scmp.ne.s32.totalorder %s121, %s123
      %p127 = scmp.eq.s32.totalorder %s24, 0
      %p128 = por %p126, %p127
      %p129 = scmp.ne.s32.totalorder %s121, %s123
      %p130 = scmp.eq.s32.totalorder %s29, 1
      %p131 = por %p129, %p130
      %p132 = scmp.ne.s32.totalorder %s123, %s124
      %p133 = scmp.eq.s32.totalorder %s29, 0
      %p134 = por %p132, %p133
      %p135 = scmp.ne.s32.totalorder %s123, %s124
      %p136 = scmp.eq.s32.totalorder %s30, 1
      %p137 = por %p135, %p136
      %p139 = scmp.ne.s32.totalorder %s124, %s138
      %p140 = scmp.eq.s32.totalorder %s30, 0
      %p141 = por %p139, %p140
      %s142 = ssub.s32 %s24, %s31
      %p143 = scmp.eq.s32.totalorder %s142, 0
      %s145 = sadd.s32 %s144, 1
      %s146 = scalar_select %p143, %s144, %s145
      %p149 = pneg %p143
      %p150 = scmp.eq.s32.totalorder %s24, 1
      %p151 = por %p149, %p150
      %p152 = scmp.ne.s32.totalorder %s144, %s147
      %p153 = scmp.eq.s32.totalorder %s24, 0
      %p154 = por %p152, %p153
      %p155 = scmp.ne.s32.totalorder %s144, %s147
      %p156 = scmp.eq.s32.totalorder %s29, 1
      %p157 = por %p155, %p156
      %p158 = scmp.ne.s32.totalorder %s147, %s148
      %p159 = scmp.eq.s32.totalorder %s29, 0
      %p160 = por %p158, %p159
      %p161 = scmp.ne.s32.totalorder %s147, %s148
      %p162 = scmp.eq.s32.totalorder %s30, 1
      %p163 = por %p161, %p162
      %p165 = scmp.ne.s32.totalorder %s148, %s164
      %p166 = scmp.eq.s32.totalorder %s30, 0
      %p167 = por %p165, %p166
      %s168 = ssub.s32 %s24, %s31
      %p169 = scmp.eq.s32.totalorder %s168, 0
      %s171 = sadd.s32 %s170, 1
      %s172 = scalar_select %p169, %s170, %s171
      %p175 = pneg %p169
      %p176 = scmp.eq.s32.totalorder %s24, 1
      %p177 = por %p175, %p176
      %p178 = scmp.ne.s32.totalorder %s170, %s173
      %p179 = scmp.eq.s32.totalorder %s24, 0
      %p180 = por %p178, %p179
      %p181 = scmp.ne.s32.totalorder %s170, %s173
      %p182 = scmp.eq.s32.totalorder %s29, 1
      %p183 = por %p181, %p182
      %p184 = scmp.ne.s32.totalorder %s173, %s174
      %p185 = scmp.eq.s32.totalorder %s29, 0
      %p186 = por %p184, %p185
      %p187 = scmp.ne.s32.totalorder %s173, %s174
      %p188 = scmp.eq.s32.totalorder %s30, 1
      %p189 = por %p187, %p188
      %p191 = scmp.ne.s32.totalorder %s174, %s190
      %p192 = scmp.eq.s32.totalorder %s30, 0
      %p193 = por %p191, %p192
      %s194 = ssub.s32 %s24, %s31
      %p195 = scmp.eq.s32.totalorder %s194, 0
      %s197 = sadd.s32 %s196, 1
      %s198 = scalar_select %p195, %s196, %s197
      %p201 = pneg %p195
      %p202 = scmp.eq.s32.totalorder %s24, 1
      %p203 = por %p201, %p202
      %p204 = scmp.ne.s32.totalorder %s196, %s199
      %p205 = scmp.eq.s32.totalorder %s24, 0
      %p206 = por %p204, %p205
      %p207 = scmp.ne.s32.totalorder %s196, %s199
      %p208 = scmp.eq.s32.totalorder %s29, 1
      %p209 = por %p207, %p208
      %p210 = scmp.ne.s32.totalorder %s199, %s200
      %p211 = scmp.eq.s32.totalorder %s29, 0
      %p212 = por %p210, %p211
      %p213 = scmp.ne.s32.totalorder %s199, %s200
      %p214 = scmp.eq.s32.totalorder %s30, 1
      %p215 = por %p213, %p214
      %p217 = scmp.ne.s32.totalorder %s200, %s216
      %p218 = scmp.eq.s32.totalorder %s30, 0
      %p219 = por %p217, %p218
      %p220 = scmp.le.s32.totalorder 1, %s24
      %p221 = scmp.lt.s32.totalorder %s24, 3
      %p222 = pnand %p220, %p221
      %p223 = pneg %p222
      // Predicated region
      $region9: #{tpu_custom_call.1} parent=5 // pred_check
        _
      $region10: #{tpu_custom_call.1} parent=5 // pred_check_branch
        %225 = sbr.rel (%p222) target = $region12
      $region11: #{tpu_custom_call.1} parent=5 // pred_region
        %s226 = ssub.s32 %s24, 1
        // Predicated region
        $region13: #{tpu_custom_call.1} parent=11 // pred_check
          %p227 = pneg %p71
        $region14: #{tpu_custom_call.1} parent=11 // pred_check_branch
          %229 = sbr.rel (%p227) target = $region16
        $region15: #{tpu_custom_call.1} parent=11 // pred_region
          %s231 = ssub.s32 4096, 4096
          %232 = vsyncadd [#allocation6], %s231
          %s233 = sshll.u32 [#allocation5], 4
          %s234 = int_to_ptr.vmem [resolvable:$true] %s233
          %239 = dma.hbm_to_vmem [thread:$0]  %s1, 4096, %s234, [#allocation6], 1024, 1024, 64
        $region16: #{tpu_custom_call.1} parent=11 // pred_fallthru
          _
        // Predicated region
        $region17: #{tpu_custom_call.1} parent=11 // pred_check
          %p240 = pneg %p92
        $region18: #{tpu_custom_call.1} parent=11 // pred_check_branch
          %242 = sbr.rel (%p240) target = $region20
        $region19: #{tpu_custom_call.1} parent=11 // pred_region
          %s244 = ssub.s32 128, 128
          %245 = vsyncadd [#allocation6], %s244
          %s247 = sshll.u32 [#allocation7], 4
          %s248 = int_to_ptr.vmem [resolvable:$true] %s247
          %250 = dma.hbm_to_vmem [thread:$0]  %s2, 128, %s248, [#allocation6]
        $region20: #{tpu_custom_call.1} parent=11 // pred_fallthru
          _
        // Predicated region
        $region21: #{tpu_custom_call.1} parent=11 // pred_check
          %p251 = pneg %p113
        $region22: #{tpu_custom_call.1} parent=11 // pred_check_branch
          %253 = sbr.rel (%p251) target = $region24
        $region23: #{tpu_custom_call.1} parent=11 // pred_region
          %s255 = ssub.s32 256, 256
          %256 = vsyncadd [#allocation9], %s255
          %s257 = sshll.u32 [#allocation8], 4
          %s258 = int_to_ptr.vmem [resolvable:$true] %s257
          %263 = dma.hbm_to_vmem [thread:$0]  %s3, 256, %s258, [#allocation9], 128, 128, 8
        $region24: #{tpu_custom_call.1} parent=11 // pred_fallthru
          _
        // Predicated region
        $region25: #{tpu_custom_call.1} parent=11 // pred_check
          %p264 = pneg %p134
        $region26: #{tpu_custom_call.1} parent=11 // pred_check_branch
          %266 = sbr.rel (%p264) target = $region28
        $region27: #{tpu_custom_call.1} parent=11 // pred_region
          %s268 = ssub.s32 256, 256
          %269 = vsyncadd [#allocation9], %s268
          %s270 = sshll.u32 [#allocation10], 4
          %s271 = int_to_ptr.vmem [resolvable:$true] %s270
          %276 = dma.hbm_to_vmem [thread:$0]  %s4, 256, %s271, [#allocation9], 128, 128, 8
        $region28: #{tpu_custom_call.1} parent=11 // pred_fallthru
          _
      $region12: #{tpu_custom_call.1} parent=5 // pred_fallthru
        _
      %p277 = scmp.lt.s32.totalorder %s24, 2
      // Predicated region
      $region29: #{tpu_custom_call.1} parent=5 // pred_check
        %p278 = pneg %p277
      $region30: #{tpu_custom_call.1} parent=5 // pred_check_branch
        %280 = sbr.rel (%p278) target = $region32
      $region31: #{tpu_custom_call.1} parent=5 // pred_region
        // Predicated region
        $region33: #{tpu_custom_call.1} parent=31 // pred_check
          %p281 = pneg %p44
        $region34: #{tpu_custom_call.1} parent=31 // pred_check_branch
          %283 = sbr.rel (%p281) target = $region36
        $region35: #{tpu_custom_call.1} parent=31 // pred_region
          %s284 = sand.u32 %s34, 1
          %s285 = scalar_lea.sflag [#allocation3], %s284
          %s286 = sand.u32 %s34, 1
          %s287 = smul.addr %s286, 16
          %s288 = scalar_lea.vmem [#allocation2], %s287
          %s290 = ssub.s32 256, 256
          %291 = vsyncadd %s285, %s290
          %s292 = smul.addr %s24, 2
          %s293 = smul.addr %s292, 128
          %s294 = scalar_lea.hbm %s0, %s293
          %s295 = sshll.u32 %s288, 4
          %s296 = int_to_ptr.vmem [resolvable:$true] %s295
          %301 = dma.hbm_to_vmem [thread:$0]  %s294, 256, %s296, %s285, 128, 128, 8
        $region36: #{tpu_custom_call.1} parent=31 // pred_fallthru
          _
        // Predicated region
        $region37: #{tpu_custom_call.1} parent=31 // pred_check
          %p302 = pneg %p154
        $region38: #{tpu_custom_call.1} parent=31 // pred_check_branch
          %304 = sbr.rel (%p302) target = $region40
        $region39: #{tpu_custom_call.1} parent=31 // pred_region
          %s305 = sand.u32 %s24, 1
          %s306 = scalar_lea.sflag [#allocation12], %s305
          %s307 = sand.u32 %s144, 1
          %s308 = scalar_lea.vmem [#allocation11], %s307
          %s310 = ssub.s32 16, 16
          %311 = vsyncadd %s306, %s310
          %s312 = smul.addr %s24, 16
          %s313 = scalar_lea.hbm %s5, %s312
          %s315 = sshll.u32 %s308, 4
          %s316 = int_to_ptr.vmem [resolvable:$true] %s315
          %318 = dma.hbm_to_vmem [thread:$0]  %s313, 16, %s316, %s306
        $region40: #{tpu_custom_call.1} parent=31 // pred_fallthru
          _
        // Predicated region
        $region41: #{tpu_custom_call.1} parent=31 // pred_check
          %p319 = pneg %p180
        $region42: #{tpu_custom_call.1} parent=31 // pred_check_branch
          %321 = sbr.rel (%p319) target = $region44
        $region43: #{tpu_custom_call.1} parent=31 // pred_region
          %s322 = sand.u32 %s24, 1
          %s323 = scalar_lea.sflag [#allocation12], %s322
          %s324 = sand.u32 %s170, 1
          %s325 = smul.addr %s324, 16
          %s326 = scalar_lea.vmem [#allocation13], %s325
          %s328 = ssub.s32 256, 256
          %329 = vsyncadd %s323, %s328
          %s330 = smul.addr %s24, 2
          %s331 = smul.addr %s330, 128
          %s332 = scalar_lea.hbm %s6, %s331
          %s333 = sshll.u32 %s326, 4
          %s334 = int_to_ptr.vmem [resolvable:$true] %s333
          %339 = dma.hbm_to_vmem [thread:$0]  %s332, 256, %s334, %s323, 128, 128, 8
        $region44: #{tpu_custom_call.1} parent=31 // pred_fallthru
          _
      $region32: #{tpu_custom_call.1} parent=5 // pred_fallthru
        _
      %p340 = scmp.le.s32.totalorder 1, %s24
      %p341 = scmp.lt.s32.totalorder %s24, 3
      %p342 = pnand %p340, %p341
      %p343 = pneg %p342
      // Predicated region
      $region45: #{tpu_custom_call.1} parent=5 // pred_check
        _
      $region46: #{tpu_custom_call.1} parent=5 // pred_check_branch
        %345 = sbr.rel (%p342) target = $region48
      $region47: #{tpu_custom_call.1} parent=5 // pred_region
        %s346 = ssub.s32 %s24, 1
        %s347 = sand.u32 %s37, 1
        %s348 = scalar_lea.sflag [#allocation3], %s347
        %s349 = sand.u32 %s37, 1
        %s350 = smul.addr %s349, 16
        %s351 = scalar_lea.vmem [#allocation2], %s350
        // Predicated region
        $region49: #{tpu_custom_call.1} parent=47 // pred_check
          %p352 = pneg %p50
        $region50: #{tpu_custom_call.1} parent=47 // pred_check_branch
          %354 = sbr.rel (%p352) target = $region52
        $region51: #{tpu_custom_call.1} parent=47 // pred_region
          %355 = dma.done %s348, 256
        $region52: #{tpu_custom_call.1} parent=47 // pred_fallthru
          _
        // Predicated region
        $region53: #{tpu_custom_call.1} parent=47 // pred_check
          %p356 = pneg %p71
        $region54: #{tpu_custom_call.1} parent=47 // pred_check_branch
          %358 = sbr.rel (%p356) target = $region56
        $region55: #{tpu_custom_call.1} parent=47 // pred_region
          %359 = dma.done [#allocation6], 4096
        $region56: #{tpu_custom_call.1} parent=47 // pred_fallthru
          _
        // Predicated region
        $region57: #{tpu_custom_call.1} parent=47 // pred_check
          %p360 = pneg %p92
        $region58: #{tpu_custom_call.1} parent=47 // pred_check_branch
          %362 = sbr.rel (%p360) target = $region60
        $region59: #{tpu_custom_call.1} parent=47 // pred_region
          %363 = dma.done [#allocation6], 128
        $region60: #{tpu_custom_call.1} parent=47 // pred_fallthru
          _
        // Predicated region
        $region61: #{tpu_custom_call.1} parent=47 // pred_check
          %p364 = pneg %p113
        $region62: #{tpu_custom_call.1} parent=47 // pred_check_branch
          %366 = sbr.rel (%p364) target = $region64
        $region63: #{tpu_custom_call.1} parent=47 // pred_region
          %367 = dma.done [#allocation9], 256
        $region64: #{tpu_custom_call.1} parent=47 // pred_fallthru
          _
        // Predicated region
        $region65: #{tpu_custom_call.1} parent=47 // pred_check
          %p368 = pneg %p134
        $region66: #{tpu_custom_call.1} parent=47 // pred_check_branch
          %370 = sbr.rel (%p368) target = $region68
        $region67: #{tpu_custom_call.1} parent=47 // pred_region
          %371 = dma.done [#allocation9], 256
        $region68: #{tpu_custom_call.1} parent=47 // pred_fallthru
          _
        %s372 = sand.u32 %s29, 1
        %s373 = scalar_lea.sflag [#allocation12], %s372
        %s374 = sand.u32 %s147, 1
        %s375 = scalar_lea.vmem [#allocation11], %s374
        // Predicated region
        $region69: #{tpu_custom_call.1} parent=47 // pred_check
          %p376 = pneg %p160
        $region70: #{tpu_custom_call.1} parent=47 // pred_check_branch
          %378 = sbr.rel (%p376) target = $region72
        $region71: #{tpu_custom_call.1} parent=47 // pred_region
          %379 = dma.done %s373, 16
        $region72: #{tpu_custom_call.1} parent=47 // pred_fallthru
          _
        %s380 = sand.u32 %s29, 1
        %s381 = scalar_lea.sflag [#allocation12], %s380
        %s382 = sand.u32 %s173, 1
        %s383 = smul.addr %s382, 16
        %s384 = scalar_lea.vmem [#allocation13], %s383
        // Predicated region
        $region73: #{tpu_custom_call.1} parent=47 // pred_check
          %p385 = pneg %p186
        $region74: #{tpu_custom_call.1} parent=47 // pred_check_branch
          %387 = sbr.rel (%p385) target = $region76
        $region75: #{tpu_custom_call.1} parent=47 // pred_region
          %388 = dma.done %s381, 256
        $region76: #{tpu_custom_call.1} parent=47 // pred_fallthru
          _
        %s389 = sand.u32 %s37, 1
        %s390 = scalar_lea.sflag [#allocation3], %s389
        %s391 = sand.u32 %s37, 1
        %s392 = smul.addr %s391, 16
        %s393 = scalar_lea.vmem [#allocation2], %s392
        %p394 = pneg %p50
        %p395 = pneg %p47
        %p396 = pneg %p71
        %p397 = pneg %p68
        %p398 = pneg %p92
        %p399 = pneg %p89
        %p400 = pneg %p113
        %p401 = pneg %p110
        %p402 = pneg %p134
        %p403 = pneg %p131
        %s404 = sand.u32 %s29, 1
        %s405 = scalar_lea.sflag [#allocation12], %s404
        %s406 = sand.u32 %s147, 1
        %s407 = scalar_lea.vmem [#allocation11], %s406
        %p408 = pneg %p160
        %p409 = pneg %p157
        %s410 = sand.u32 %s29, 1
        %s411 = scalar_lea.sflag [#allocation12], %s410
        %s412 = sand.u32 %s173, 1
        %s413 = smul.addr %s412, 16
        %s414 = scalar_lea.vmem [#allocation13], %s413
        %p415 = pneg %p186
        %p416 = pneg %p183
        %p417 = pneg %p212
        %p418 = pneg %p209
        %s419 = sand.u32 %s199, 1
        %s420 = scalar_lea.sflag [#allocation4], %s419
        %s421 = sand.u32 %s199, 1
        %s422 = smul.addr %s421, 32
        %s423 = scalar_lea.vmem [#allocation14], %s422
        %v424 = vld [vmem:[%s351] sm:$0xff]
        %v425 = vld [vmem:[%s351 + $0x8] sm:$0xff]
        %v426 = vld [vmem:[#allocation5] sm:$0xff]
        %v427 = vld [vmem:[#allocation5 + $0x8] sm:$0xff]
        %v428 = vld [vmem:[#allocation5 + $0x10] sm:$0xff]
        %v429 = vld [vmem:[#allocation5 + $0x18] sm:$0xff]
        %v430 = vld [vmem:[#allocation5 + $0x20] sm:$0xff]
        %v431 = vld [vmem:[#allocation5 + $0x28] sm:$0xff]
        %v432 = vld [vmem:[#allocation5 + $0x30] sm:$0xff]
        %v433 = vld [vmem:[#allocation5 + $0x38] sm:$0xff]
        %v434 = vld [vmem:[#allocation5 + $0x40] sm:$0xff]
        %v435 = vld [vmem:[#allocation5 + $0x48] sm:$0xff]
        %v436 = vld [vmem:[#allocation5 + $0x50] sm:$0xff]
        %v437 = vld [vmem:[#allocation5 + $0x58] sm:$0xff]
        %v438 = vld [vmem:[#allocation5 + $0x60] sm:$0xff]
        %v439 = vld [vmem:[#allocation5 + $0x68] sm:$0xff]
        %v440 = vld [vmem:[#allocation5 + $0x70] sm:$0xff]
        %v441 = vld [vmem:[#allocation5 + $0x78] sm:$0xff]
        %v442 = vld [vmem:[#allocation5 + $0x80] sm:$0xff]
        %v443 = vld [vmem:[#allocation5 + $0x88] sm:$0xff]
        %v444 = vld [vmem:[#allocation5 + $0x90] sm:$0xff]
        %v445 = vld [vmem:[#allocation5 + $0x98] sm:$0xff]
        %v446 = vld [vmem:[#allocation5 + $0xa0] sm:$0xff]
        %v447 = vld [vmem:[#allocation5 + $0xa8] sm:$0xff]
        %v448 = vld [vmem:[#allocation5 + $0xb0] sm:$0xff]
        %v449 = vld [vmem:[#allocation5 + $0xb8] sm:$0xff]
        %v450 = vld [vmem:[#allocation5 + $0xc0] sm:$0xff]
        %v451 = vld [vmem:[#allocation5 + $0xc8] sm:$0xff]
        %v452 = vld [vmem:[#allocation5 + $0xd0] sm:$0xff]
        %v453 = vld [vmem:[#allocation5 + $0xd8] sm:$0xff]
        %v454 = vld [vmem:[#allocation5 + $0xe0] sm:$0xff]
        %v455 = vld [vmem:[#allocation5 + $0xe8] sm:$0xff]
        %v456 = vld [vmem:[#allocation5 + $0xf0] sm:$0xff]
        %v457 = vld [vmem:[#allocation5 + $0xf8] sm:$0xff]
        %v458 = vld [vmem:[#allocation7] sm:$0xff]
        %v460 = vlaneseq
        %v461 = vshrl.u32 %v460, 7
        %v462 = vsub.s32 0, %v461
        %v463 = vrot.slane %v458, %v462
        %v464 = vlaneseq
        %v465 = vshrl.u32 %v464, 7
        %v466 = vsub.s32 1, %v465
        %v467 = vrot.slane %v458, %v466
        %v468 = vlaneseq
        %v469 = vshrl.u32 %v468, 7
        %v470 = vsub.s32 2, %v469
        %v471 = vrot.slane %v458, %v470
        %v472 = vlaneseq
        %v473 = vshrl.u32 %v472, 7
        %v474 = vsub.s32 3, %v473
        %v475 = vrot.slane %v458, %v474
        %v476 = vlaneseq
        %v477 = vshrl.u32 %v476, 7
        %v478 = vsub.s32 4, %v477
        %v479 = vrot.slane %v458, %v478
        %v480 = vlaneseq
        %v481 = vshrl.u32 %v480, 7
        %v482 = vsub.s32 5, %v481
        %v483 = vrot.slane %v458, %v482
        %v484 = vlaneseq
        %v485 = vshrl.u32 %v484, 7
        %v486 = vsub.s32 6, %v485
        %v487 = vrot.slane %v458, %v486
        %v488 = vlaneseq
        %v489 = vshrl.u32 %v488, 7
        %v490 = vsub.s32 7, %v489
        %v491 = vrot.slane %v458, %v490
        %vm500 = vcmask 261120
        %v502 = vsel %vm500, %v424, 0
        %v505 = vsel %vm500, %v425, 0
        %507 = vmatprep.subr.mxu0 %v427
        %508 = vmatpush1.msra.mxu0 %v426
        %509 = vmatprep.subr.mxu0 %v435
        %510 = vmatpush1.msra.mxu0 %v434
        %511 = vmatprep.subr.mxu0 %v443
        %512 = vmatpush1.msra.mxu0 %v442
        %513 = vmatprep.subr.mxu0 %v451
        %514 = vmatpush1.msra.mxu0 %v450
        %515 = vmatprep.subr.mxu0 0.0
        %516 = vmatpush1.msra.mxu0 0.0
        %517 = vmatprep.subr.mxu0 0.0
        %518 = vmatpush1.msra.mxu0 0.0
        %519 = vmatprep.subr.mxu0 0.0
        %520 = vmatpush1.msra.mxu0 0.0
        %521 = vmatprep.subr.mxu0 0.0
        %522 = vmatpush1.msra.mxu0 0.0
        %523 = vmatprep.subr.mxu0 0.0
        %524 = vmatpush1.msra.mxu0 0.0
        %525 = vmatprep.subr.mxu0 0.0
        %526 = vmatpush1.msra.mxu0 0.0
        %527 = vmatprep.subr.mxu0 0.0
        %528 = vmatpush1.msra.mxu0 0.0
        %529 = vmatprep.subr.mxu0 0.0
        %530 = vmatpush1.msra.mxu0 0.0
        %531 = vmatprep.subr.mxu0 0.0
        %532 = vmatpush1.msra.mxu0 0.0
        %533 = vmatprep.subr.mxu0 0.0
        %534 = vmatpush1.msra.mxu0 0.0
        %535 = vmatprep.subr.mxu0 0.0
        %536 = vmatpush1.msra.mxu0 0.0
        %537 = vmatprep.subr.mxu0 0.0
        %538 = vmatpush1.msra.mxu0 0.0
        %539 = vmatprep.subr.mxu0 0.0
        %540 = vmatpush1.msra.mxu0 0.0
        %541 = vmatprep.subr.mxu0 0.0
        %542 = vmatpush1.msra.mxu0 0.0
        %543 = vmatprep.subr.mxu0 0.0
        %544 = vmatpush1.msra.mxu0 0.0
        %545 = vmatprep.subr.mxu0 0.0
        %546 = vmatpush1.msra.mxu0 0.0
        %547 = vmatprep.subr.mxu0 0.0
        %548 = vmatpush1.msra.mxu0 0.0
        %549 = vmatprep.subr.mxu0 0.0
        %550 = vmatpush1.msra.mxu0 0.0
        %551 = vmatprep.subr.mxu0 0.0
        %552 = vmatpush1.msra.mxu0 0.0
        %553 = vmatprep.subr.mxu0 0.0
        %554 = vmatpush1.msra.mxu0 0.0
        %555 = vmatprep.subr.mxu0 0.0
        %556 = vmatpush1.msra.mxu0 0.0
        %557 = vmatprep.subr.mxu0 0.0
        %558 = vmatpush1.msra.mxu0 0.0
        %559 = vmatprep.subr.mxu0 0.0
        %560 = vmatpush1.msra.mxu0 0.0
        %561 = vmatprep.subr.mxu0 0.0
        %562 = vmatpush1.msra.mxu0 0.0
        %563 = vmatprep.subr.mxu0 0.0
        %564 = vmatpush1.msra.mxu0 0.0
        %565 = vmatprep.subr.mxu0 0.0
        %566 = vmatpush1.msra.mxu0 0.0
        %567 = vmatprep.subr.mxu0 0.0
        %568 = vmatpush1.msra.mxu0 0.0
        %569 = vmatprep.subr.mxu0 0.0
        %570 = vmatpush1.msra.mxu0 0.0
        %571 = vmatprep.mubr.f32.mxu0 0.0
        %572 = vmatmul.mubr.f32.gmra.mrb[0].mxu0 %v502
        %v573 = vpop.f32.mrb[0].mxu0
        %v574 = vadd.f32 %v463, %v573
        %v575 = vpop.f32.mrb[0].mxu0
        %v576 = vadd.f32 %v467, %v575
        %577 = vmatprep.mubr.f32.mxu0 0.0
        %578 = vmatmul.mubr.f32.gmra.mrb[0].mxu0 %v505
        %v579 = vpop.f32.mrb[0].mxu0
        %v580 = vadd.f32 %v463, %v579
        %v581 = vpop.f32.mrb[0].mxu0
        %v582 = vadd.f32 %v467, %v581
        %583 = vdwg.mxu0
        %584 = vmatprep.subr.mxu0 %v429
        %585 = vmatpush1.msra.mxu0 %v428
        %586 = vmatprep.subr.mxu0 %v437
        %587 = vmatpush1.msra.mxu0 %v436
        %588 = vmatprep.subr.mxu0 %v445
        %589 = vmatpush1.msra.mxu0 %v444
        %590 = vmatprep.subr.mxu0 %v453
        %591 = vmatpush1.msra.mxu0 %v452
        %592 = vmatprep.subr.mxu0 0.0
        %593 = vmatpush1.msra.mxu0 0.0
        %594 = vmatprep.subr.mxu0 0.0
        %595 = vmatpush1.msra.mxu0 0.0
        %596 = vmatprep.subr.mxu0 0.0
        %597 = vmatpush1.msra.mxu0 0.0
        %598 = vmatprep.subr.mxu0 0.0
        %599 = vmatpush1.msra.mxu0 0.0
        %600 = vmatprep.subr.mxu0 0.0
        %601 = vmatpush1.msra.mxu0 0.0
        %602 = vmatprep.subr.mxu0 0.0
        %603 = vmatpush1.msra.mxu0 0.0
        %604 = vmatprep.subr.mxu0 0.0
        %605 = vmatpush1.msra.mxu0 0.0
        %606 = vmatprep.subr.mxu0 0.0
        %607 = vmatpush1.msra.mxu0 0.0
        %608 = vmatprep.subr.mxu0 0.0
        %609 = vmatpush1.msra.mxu0 0.0
        %610 = vmatprep.subr.mxu0 0.0
        %611 = vmatpush1.msra.mxu0 0.0
        %612 = vmatprep.subr.mxu0 0.0
        %613 = vmatpush1.msra.mxu0 0.0
        %614 = vmatprep.subr.mxu0 0.0
        %615 = vmatpush1.msra.mxu0 0.0
        %616 = vmatprep.subr.mxu0 0.0
        %617 = vmatpush1.msra.mxu0 0.0
        %618 = vmatprep.subr.mxu0 0.0
        %619 = vmatpush1.msra.mxu0 0.0
        %620 = vmatprep.subr.mxu0 0.0
        %621 = vmatpush1.msra.mxu0 0.0
        %622 = vmatprep.subr.mxu0 0.0
        %623 = vmatpush1.msra.mxu0 0.0
        %624 = vmatprep.subr.mxu0 0.0
        %625 = vmatpush1.msra.mxu0 0.0
        %626 = vmatprep.subr.mxu0 0.0
        %627 = vmatpush1.msra.mxu0 0.0
        %628 = vmatprep.subr.mxu0 0.0
        %629 = vmatpush1.msra.mxu0 0.0
        %630 = vmatprep.subr.mxu0 0.0
        %631 = vmatpush1.msra.mxu0 0.0
        %632 = vmatprep.subr.mxu0 0.0
        %633 = vmatpush1.msra.mxu0 0.0
        %634 = vmatprep.subr.mxu0 0.0
        %635 = vmatpush1.msra.mxu0 0.0
        %636 = vmatprep.subr.mxu0 0.0
        %637 = vmatpush1.msra.mxu0 0.0
        %638 = vmatprep.subr.mxu0 0.0
        %639 = vmatpush1.msra.mxu0 0.0
        %640 = vmatprep.subr.mxu0 0.0
        %641 = vmatpush1.msra.mxu0 0.0
        %642 = vmatprep.subr.mxu0 0.0
        %643 = vmatpush1.msra.mxu0 0.0
        %644 = vmatprep.subr.mxu0 0.0
        %645 = vmatpush1.msra.mxu0 0.0
        %646 = vmatprep.subr.mxu0 0.0
        %647 = vmatpush1.msra.mxu0 0.0
        %648 = vmatprep.mubr.f32.mxu0 0.0
        %649 = vmatmul.mubr.f32.gmra.mrb[0].mxu0 %v502
        %v650 = vpop.f32.mrb[0].mxu0
        %v651 = vadd.f32 %v471, %v650
        %v652 = vpop.f32.mrb[0].mxu0
        %v653 = vadd.f32 %v475, %v652
        %654 = vmatprep.mubr.f32.mxu0 0.0
        %655 = vmatmul.mubr.f32.gmra.mrb[0].mxu0 %v505
        %v656 = vpop.f32.mrb[0].mxu0
        %v657 = vadd.f32 %v471, %v656
        %v658 = vpop.f32.mrb[0].mxu0
        %v659 = vadd.f32 %v475, %v658
        %660 = vdwg.mxu0
        %661 = vmatprep.subr.mxu0 %v431
        %662 = vmatpush1.msra.mxu0 %v430
        %663 = vmatprep.subr.mxu0 %v439
        %664 = vmatpush1.msra.mxu0 %v438
        %665 = vmatprep.subr.mxu0 %v447
        %666 = vmatpush1.msra.mxu0 %v446
        %667 = vmatprep.subr.mxu0 %v455
        %668 = vmatpush1.msra.mxu0 %v454
        %669 = vmatprep.subr.mxu0 0.0
        %670 = vmatpush1.msra.mxu0 0.0
        %671 = vmatprep.subr.mxu0 0.0
        %672 = vmatpush1.msra.mxu0 0.0
        %673 = vmatprep.subr.mxu0 0.0
        %674 = vmatpush1.msra.mxu0 0.0
        %675 = vmatprep.subr.mxu0 0.0
        %676 = vmatpush1.msra.mxu0 0.0
        %677 = vmatprep.subr.mxu0 0.0
        %678 = vmatpush1.msra.mxu0 0.0
        %679 = vmatprep.subr.mxu0 0.0
        %680 = vmatpush1.msra.mxu0 0.0
        %681 = vmatprep.subr.mxu0 0.0
        %682 = vmatpush1.msra.mxu0 0.0
        %683 = vmatprep.subr.mxu0 0.0
        %684 = vmatpush1.msra.mxu0 0.0
        %685 = vmatprep.subr.mxu0 0.0
        %686 = vmatpush1.msra.mxu0 0.0
        %687 = vmatprep.subr.mxu0 0.0
        %688 = vmatpush1.msra.mxu0 0.0
        %689 = vmatprep.subr.mxu0 0.0
        %690 = vmatpush1.msra.mxu0 0.0
        %691 = vmatprep.subr.mxu0 0.0
        %692 = vmatpush1.msra.mxu0 0.0
        %693 = vmatprep.subr.mxu0 0.0
        %694 = vmatpush1.msra.mxu0 0.0
        %695 = vmatprep.subr.mxu0 0.0
        %696 = vmatpush1.msra.mxu0 0.0
        %697 = vmatprep.subr.mxu0 0.0
        %698 = vmatpush1.msra.mxu0 0.0
        %699 = vmatprep.subr.mxu0 0.0
        %700 = vmatpush1.msra.mxu0 0.0
        %701 = vmatprep.subr.mxu0 0.0
        %702 = vmatpush1.msra.mxu0 0.0
        %703 = vmatprep.subr.mxu0 0.0
        %704 = vmatpush1.msra.mxu0 0.0
        %705 = vmatprep.subr.mxu0 0.0
        %706 = vmatpush1.msra.mxu0 0.0
        %707 = vmatprep.subr.mxu0 0.0
        %708 = vmatpush1.msra.mxu0 0.0
        %709 = vmatprep.subr.mxu0 0.0
        %710 = vmatpush1.msra.mxu0 0.0
        %711 = vmatprep.subr.mxu0 0.0
        %712 = vmatpush1.msra.mxu0 0.0
        %713 = vmatprep.subr.mxu0 0.0
        %714 = vmatpush1.msra.mxu0 0.0
        %715 = vmatprep.subr.mxu0 0.0
        %716 = vmatpush1.msra.mxu0 0.0
        %717 = vmatprep.subr.mxu0 0.0
        %718 = vmatpush1.msra.mxu0 0.0
        %719 = vmatprep.subr.mxu0 0.0
        %720 = vmatpush1.msra.mxu0 0.0
        %721 = vmatprep.subr.mxu0 0.0
        %722 = vmatpush1.msra.mxu0 0.0
        %723 = vmatprep.subr.mxu0 0.0
        %724 = vmatpush1.msra.mxu0 0.0
        %725 = vmatprep.mubr.f32.mxu0 0.0
        %726 = vmatmul.mubr.f32.gmra.mrb[0].mxu0 %v502
        %v727 = vpop.f32.mrb[0].mxu0
        %v728 = vadd.f32 %v479, %v727
        %v729 = vpop.f32.mrb[0].mxu0
        %v730 = vadd.f32 %v483, %v729
        %731 = vmatprep.mubr.f32.mxu0 0.0
        %732 = vmatmul.mubr.f32.gmra.mrb[0].mxu0 %v505
        %v733 = vpop.f32.mrb[0].mxu0
        %v734 = vadd.f32 %v479, %v733
        %v735 = vpop.f32.mrb[0].mxu0
        %v736 = vadd.f32 %v483, %v735
        %737 = vdwg.mxu0
        %738 = vmatprep.subr.mxu0 %v433
        %739 = vmatpush1.msra.mxu0 %v432
        %740 = vmatprep.subr.mxu0 %v441
        %741 = vmatpush1.msra.mxu0 %v440
        %742 = vmatprep.subr.mxu0 %v449
        %743 = vmatpush1.msra.mxu0 %v448
        %744 = vmatprep.subr.mxu0 %v457
        %745 = vmatpush1.msra.mxu0 %v456
        %746 = vmatprep.subr.mxu0 0.0
        %747 = vmatpush1.msra.mxu0 0.0
        %748 = vmatprep.subr.mxu0 0.0
        %749 = vmatpush1.msra.mxu0 0.0
        %750 = vmatprep.subr.mxu0 0.0
        %751 = vmatpush1.msra.mxu0 0.0
        %752 = vmatprep.subr.mxu0 0.0
        %753 = vmatpush1.msra.mxu0 0.0
        %754 = vmatprep.subr.mxu0 0.0
        %755 = vmatpush1.msra.mxu0 0.0
        %756 = vmatprep.subr.mxu0 0.0
        %757 = vmatpush1.msra.mxu0 0.0
        %758 = vmatprep.subr.mxu0 0.0
        %759 = vmatpush1.msra.mxu0 0.0
        %760 = vmatprep.subr.mxu0 0.0
        %761 = vmatpush1.msra.mxu0 0.0
        %762 = vmatprep.subr.mxu0 0.0
        %763 = vmatpush1.msra.mxu0 0.0
        %764 = vmatprep.subr.mxu0 0.0
        %765 = vmatpush1.msra.mxu0 0.0
        %766 = vmatprep.subr.mxu0 0.0
        %767 = vmatpush1.msra.mxu0 0.0
        %768 = vmatprep.subr.mxu0 0.0
        %769 = vmatpush1.msra.mxu0 0.0
        %770 = vmatprep.subr.mxu0 0.0
        %771 = vmatpush1.msra.mxu0 0.0
        %772 = vmatprep.subr.mxu0 0.0
        %773 = vmatpush1.msra.mxu0 0.0
        %774 = vmatprep.subr.mxu0 0.0
        %775 = vmatpush1.msra.mxu0 0.0
        %776 = vmatprep.subr.mxu0 0.0
        %777 = vmatpush1.msra.mxu0 0.0
        %778 = vmatprep.subr.mxu0 0.0
        %779 = vmatpush1.msra.mxu0 0.0
        %780 = vmatprep.subr.mxu0 0.0
        %781 = vmatpush1.msra.mxu0 0.0
        %782 = vmatprep.subr.mxu0 0.0
        %783 = vmatpush1.msra.mxu0 0.0
        %784 = vmatprep.subr.mxu0 0.0
        %785 = vmatpush1.msra.mxu0 0.0
        %786 = vmatprep.subr.mxu0 0.0
        %787 = vmatpush1.msra.mxu0 0.0
        %788 = vmatprep.subr.mxu0 0.0
        %789 = vmatpush1.msra.mxu0 0.0
        %790 = vmatprep.subr.mxu0 0.0
        %791 = vmatpush1.msra.mxu0 0.0
        %792 = vmatprep.subr.mxu0 0.0
        %793 = vmatpush1.msra.mxu0 0.0
        %794 = vmatprep.subr.mxu0 0.0
        %795 = vmatpush1.msra.mxu0 0.0
        %796 = vmatprep.subr.mxu0 0.0
        %797 = vmatpush1.msra.mxu0 0.0
        %798 = vmatprep.subr.mxu0 0.0
        %799 = vmatpush1.msra.mxu0 0.0
        %800 = vmatprep.subr.mxu0 0.0
        %801 = vmatpush1.msra.mxu0 0.0
        %802 = vmatprep.mubr.f32.mxu0 0.0
        %803 = vmatmul.mubr.f32.gmra.mrb[0].mxu0 %v502
        %v804 = vpop.f32.mrb[0].mxu0
        %v805 = vadd.f32 %v487, %v804
        %v806 = vpop.f32.mrb[0].mxu0
        %v807 = vadd.f32 %v491, %v806
        %808 = vmatprep.mubr.f32.mxu0 0.0
        %809 = vmatmul.mubr.f32.gmra.mrb[0].mxu0 %v505
        %v810 = vpop.f32.mrb[0].mxu0
        %v811 = vadd.f32 %v487, %v810
        %v812 = vpop.f32.mrb[0].mxu0
        %v813 = vadd.f32 %v491, %v812
        %814 = vdwg.mxu0
        %v815 = vld [vmem:[#allocation8] sm:$0xff]
        %v816 = vld [vmem:[#allocation8 + $0x8] sm:$0xff]
        %v817 = vld [vmem:[#allocation10] sm:$0xff]
        %v818 = vld [vmem:[#allocation10 + $0x8] sm:$0xff]
        %v819 = vld [vmem:[%s384] sm:$0xff]
        %v820 = vld [vmem:[%s384 + $0x8] sm:$0xff]
        %822 = vset.pattern.permute.xlu0 0
        %823 = vperm.xlu0 %822, %v819
        %v824 = vpop.permute.xlu0 %823
        %827 = vset.pattern.permute.xlu0 0
        %828 = vperm.xlu0 %827, %v820
        %v829 = vpop.permute.xlu0 %828
        %v831 = vmul.f32 %v815, %v824
        %v832 = vmul.f32 %v816, %v829
        %v833 = vmul.f32 %v817, %v824
        %v834 = vmul.f32 %v818, %v829
        %v835 = vlaneseq
        %v836 = vshrl.u32 %v835, 7
        %v837 = vadd.s32 %v836, 8
        %v838 = vlaneseq
        %v839 = vand.u32 %v838, 127
        %vm840 = vcmp.gt.s32.totalorder %v836, %v839
        %vm841 = vcmp.gt.s32.totalorder %v837, %v839
        %v842 = vsel %vm840, 1, 0
        %v843 = vsel %vm841, 1, 0
        %v844 = vcvt.s32.f32 %v842
        %v845 = vcvt.s32.f32 %v843
        %v846 = vld [vmem:[%s375] sm:$0x1]
        %v847 = vsub.f32 1.0, %v846
        %v848 = vsub.f32 0.0, %v847
        %v849 = vmul.f32 %v848, 1e+12
        %v850 = vmul.f32 %v844, 1e+12
        %v851 = vmul.f32 %v845, 1e+12
        %v853 = vlaneseq
        %v854 = vshrl.u32 %v853, 7
        %v855 = vsub.s32 0, %v854
        %v856 = vrot.slane %v849, %v855
        %v858 = vsub.f32 %v856, %v850
        %v859 = vsub.f32 %v856, %v851
        %v860 = vmul.f32 %v858, 0.088388346
        %v861 = vmul.f32 %v859, 0.088388346
        %v862 = vmul.f32 %v574, %v815
        %v863 = vmul.f32 %v580, %v816
        %v864 = vmul.f32 %v728, %v817
        %v865 = vmul.f32 %v734, %v818
        %v866 = vadd.f32 %v862, %v864
        %v867 = vadd.f32 %v863, %v865
        %v868 = vmul.f32 %v576, %v831
        %v869 = vmul.f32 %v582, %v832
        %v870 = vmul.f32 %v730, %v833
        %v871 = vmul.f32 %v736, %v834
        %v872 = vadd.f32 %v868, %v870
        %v873 = vadd.f32 %v869, %v871
        %874 = vmatprep.subr.mxu0 0.0
        %875 = vmatpush1.xpose.msra.mxu0 %v872
        %876 = vmatprep.subr.mxu0 0.0
        %877 = vmatpush1.xpose.msra.mxu0 %v873
        %878 = vmatprep.subr.mxu0 0.0
        %879 = vmatpush1.xpose.msra.mxu0 0.0
        %880 = vmatprep.subr.mxu0 0.0
        %881 = vmatpush1.xpose.msra.mxu0 0.0
        %882 = vmatprep.subr.mxu0 0.0
        %883 = vmatpush1.xpose.msra.mxu0 0.0
        %884 = vmatprep.subr.mxu0 0.0
        %885 = vmatpush1.xpose.msra.mxu0 0.0
        %886 = vmatprep.subr.mxu0 0.0
        %887 = vmatpush1.xpose.msra.mxu0 0.0
        %888 = vmatprep.subr.mxu0 0.0
        %889 = vmatpush1.xpose.msra.mxu0 0.0
        %890 = vmatprep.subr.mxu0 0.0
        %891 = vmatpush1.xpose.msra.mxu0 0.0
        %892 = vmatprep.subr.mxu0 0.0
        %893 = vmatpush1.xpose.msra.mxu0 0.0
        %894 = vmatprep.subr.mxu0 0.0
        %895 = vmatpush1.xpose.msra.mxu0 0.0
        %896 = vmatprep.subr.mxu0 0.0
        %897 = vmatpush1.xpose.msra.mxu0 0.0
        %898 = vmatprep.subr.mxu0 0.0
        %899 = vmatpush1.xpose.msra.mxu0 0.0
        %900 = vmatprep.subr.mxu0 0.0
        %901 = vmatpush1.xpose.msra.mxu0 0.0
        %902 = vmatprep.subr.mxu0 0.0
        %903 = vmatpush1.xpose.msra.mxu0 0.0
        %904 = vmatprep.subr.mxu0 0.0
        %905 = vmatpush1.xpose.msra.mxu0 0.0
        %906 = vmatprep.subr.mxu0 0.0
        %907 = vmatpush1.xpose.msra.mxu0 0.0
        %908 = vmatprep.subr.mxu0 0.0
        %909 = vmatpush1.xpose.msra.mxu0 0.0
        %910 = vmatprep.subr.mxu0 0.0
        %911 = vmatpush1.xpose.msra.mxu0 0.0
        %912 = vmatprep.subr.mxu0 0.0
        %913 = vmatpush1.xpose.msra.mxu0 0.0
        %914 = vmatprep.subr.mxu0 0.0
        %915 = vmatpush1.xpose.msra.mxu0 0.0
        %916 = vmatprep.subr.mxu0 0.0
        %917 = vmatpush1.xpose.msra.mxu0 0.0
        %918 = vmatprep.subr.mxu0 0.0
        %919 = vmatpush1.xpose.msra.mxu0 0.0
        %920 = vmatprep.subr.mxu0 0.0
        %921 = vmatpush1.xpose.msra.mxu0 0.0
        %922 = vmatprep.subr.mxu0 0.0
        %923 = vmatpush1.xpose.msra.mxu0 0.0
        %924 = vmatprep.subr.mxu0 0.0
        %925 = vmatpush1.xpose.msra.mxu0 0.0
        %926 = vmatprep.subr.mxu0 0.0
        %927 = vmatpush1.xpose.msra.mxu0 0.0
        %928 = vmatprep.subr.mxu0 0.0
        %929 = vmatpush1.xpose.msra.mxu0 0.0
        %930 = vmatprep.subr.mxu0 0.0
        %931 = vmatpush1.xpose.msra.mxu0 0.0
        %932 = vmatprep.subr.mxu0 0.0
        %933 = vmatpush1.xpose.msra.mxu0 0.0
        %934 = vmatprep.subr.mxu0 0.0
        %935 = vmatpush1.xpose.msra.mxu0 0.0
        %936 = vmatprep.subr.mxu0 0.0
        %937 = vmatpush1.xpose.msra.mxu0 0.0
        %938 = vmatprep.mubr.f32.mxu0 0.0
        %939 = vmatmul.mubr.f32.gmra.mrb[0].mxu0 %v866
        %v940 = vpop.f32.mrb[0].mxu0
        %v941 = vadd.f32 %v860, %v940
        %v942 = vpop.f32.mrb[0].mxu0
        %943 = vmatprep.mubr.f32.mxu0 0.0
        %944 = vmatmul.mubr.f32.gmra.mrb[0].mxu0 %v867
        %v945 = vpop.f32.mrb[0].mxu0
        %v946 = vadd.f32 %v861, %v945
        %v947 = vpop.f32.mrb[0].mxu0
        %948 = vdwg.mxu0
        %vm949 = vcmask 130048
        %950 = vst.msk [vmem:[%s423] sm:$0xff] %vm949, %v941
        %951 = vst.msk [vmem:[%s423 + $0x8] sm:$0xff] %vm949, %v946
        %v952 = vmul.f32 %v651, %v815
        %v953 = vmul.f32 %v657, %v816
        %v954 = vmul.f32 %v805, %v817
        %v955 = vmul.f32 %v811, %v818
        %v956 = vadd.f32 %v952, %v954
        %v957 = vadd.f32 %v953, %v955
        %v958 = vmul.f32 %v653, %v831
        %v959 = vmul.f32 %v659, %v832
        %v960 = vmul.f32 %v807, %v833
        %v961 = vmul.f32 %v813, %v834
        %v962 = vadd.f32 %v958, %v960
        %v963 = vadd.f32 %v959, %v961
        %964 = vmatprep.subr.mxu0 0.0
        %965 = vmatpush1.xpose.msra.mxu0 %v962
        %966 = vmatprep.subr.mxu0 0.0
        %967 = vmatpush1.xpose.msra.mxu0 %v963
        %968 = vmatprep.subr.mxu0 0.0
        %969 = vmatpush1.xpose.msra.mxu0 0.0
        %970 = vmatprep.subr.mxu0 0.0
        %971 = vmatpush1.xpose.msra.mxu0 0.0
        %972 = vmatprep.subr.mxu0 0.0
        %973 = vmatpush1.xpose.msra.mxu0 0.0
        %974 = vmatprep.subr.mxu0 0.0
        %975 = vmatpush1.xpose.msra.mxu0 0.0
        %976 = vmatprep.subr.mxu0 0.0
        %977 = vmatpush1.xpose.msra.mxu0 0.0
        %978 = vmatprep.subr.mxu0 0.0
        %979 = vmatpush1.xpose.msra.mxu0 0.0
        %980 = vmatprep.subr.mxu0 0.0
        %981 = vmatpush1.xpose.msra.mxu0 0.0
        %982 = vmatprep.subr.mxu0 0.0
        %983 = vmatpush1.xpose.msra.mxu0 0.0
        %984 = vmatprep.subr.mxu0 0.0
        %985 = vmatpush1.xpose.msra.mxu0 0.0
        %986 = vmatprep.subr.mxu0 0.0
        %987 = vmatpush1.xpose.msra.mxu0 0.0
        %988 = vmatprep.subr.mxu0 0.0
        %989 = vmatpush1.xpose.msra.mxu0 0.0
        %990 = vmatprep.subr.mxu0 0.0
        %991 = vmatpush1.xpose.msra.mxu0 0.0
        %992 = vmatprep.subr.mxu0 0.0
        %993 = vmatpush1.xpose.msra.mxu0 0.0
        %994 = vmatprep.subr.mxu0 0.0
        %995 = vmatpush1.xpose.msra.mxu0 0.0
        %996 = vmatprep.subr.mxu0 0.0
        %997 = vmatpush1.xpose.msra.mxu0 0.0
        %998 = vmatprep.subr.mxu0 0.0
        %999 = vmatpush1.xpose.msra.mxu0 0.0
        %1000 = vmatprep.subr.mxu0 0.0
        %1001 = vmatpush1.xpose.msra.mxu0 0.0
        %1002 = vmatprep.subr.mxu0 0.0
        %1003 = vmatpush1.xpose.msra.mxu0 0.0
        %1004 = vmatprep.subr.mxu0 0.0
        %1005 = vmatpush1.xpose.msra.mxu0 0.0
        %1006 = vmatprep.subr.mxu0 0.0
        %1007 = vmatpush1.xpose.msra.mxu0 0.0
        %1008 = vmatprep.subr.mxu0 0.0
        %1009 = vmatpush1.xpose.msra.mxu0 0.0
        %1010 = vmatprep.subr.mxu0 0.0
        %1011 = vmatpush1.xpose.msra.mxu0 0.0
        %1012 = vmatprep.subr.mxu0 0.0
        %1013 = vmatpush1.xpose.msra.mxu0 0.0
        %1014 = vmatprep.subr.mxu0 0.0
        %1015 = vmatpush1.xpose.msra.mxu0 0.0
        %1016 = vmatprep.subr.mxu0 0.0
        %1017 = vmatpush1.xpose.msra.mxu0 0.0
        %1018 = vmatprep.subr.mxu0 0.0
        %1019 = vmatpush1.xpose.msra.mxu0 0.0
        %1020 = vmatprep.subr.mxu0 0.0
        %1021 = vmatpush1.xpose.msra.mxu0 0.0
        %1022 = vmatprep.subr.mxu0 0.0
        %1023 = vmatpush1.xpose.msra.mxu0 0.0
        %1024 = vmatprep.subr.mxu0 0.0
        %1025 = vmatpush1.xpose.msra.mxu0 0.0
        %1026 = vmatprep.subr.mxu0 0.0
        %1027 = vmatpush1.xpose.msra.mxu0 0.0
        %1028 = vmatprep.mubr.f32.mxu0 0.0
        %1029 = vmatmul.mubr.f32.gmra.mrb[0].mxu0 %v956
        %v1030 = vpop.f32.mrb[0].mxu0
        %v1031 = vadd.f32 %v860, %v1030
        %v1032 = vpop.f32.mrb[0].mxu0
        %1033 = vmatprep.mubr.f32.mxu0 0.0
        %1034 = vmatmul.mubr.f32.gmra.mrb[0].mxu0 %v957
        %v1035 = vpop.f32.mrb[0].mxu0
        %v1036 = vadd.f32 %v861, %v1035
        %v1037 = vpop.f32.mrb[0].mxu0
        %1038 = vdwg.mxu0
        %s1039 = scalar_lea.vmem %s423, 16 [#allocation14]
        %1040 = vst.msk [vmem:[%s1039] sm:$0xff] %vm949, %v1031
        %1041 = vst.msk [vmem:[%s1039 + $0x8] sm:$0xff] %vm949, %v1036
        %s1042 = sand.u32 %s199, 1
        %s1043 = scalar_lea.sflag [#allocation4], %s1042
        %s1044 = sand.u32 %s199, 1
        %s1045 = smul.addr %s1044, 32
        %s1046 = scalar_lea.vmem [#allocation14], %s1045
        // Predicated region
        $region77: #{tpu_custom_call.1} parent=47 // pred_check
          %p1047 = pneg %p209
        $region78: #{tpu_custom_call.1} parent=47 // pred_check_branch
          %1049 = sbr.rel (%p1047) target = $region80
        $region79: #{tpu_custom_call.1} parent=47 // pred_region
          %s1051 = ssub.s32 512, 512
          %1052 = vsyncadd %s1043, %s1051
          %s1053 = smul.addr %s29, 4
          %s1054 = smul.addr %s1053, 128
          %s1055 = scalar_lea.hbm %s7, %s1054
          %s1056 = sshll.u32 %s1046, 4
          %s1057 = int_to_ptr.vmem [resolvable:$true] %s1056
          %1062 = dma.vmem_to_hbm [thread:$0]  %s1057, 512, %s1055, %s1043, 128, 128, 8
        $region80: #{tpu_custom_call.1} parent=47 // pred_fallthru
          _
      $region48: #{tpu_custom_call.1} parent=5 // pred_fallthru
        _
      %p1063 = scmp.le.s32.totalorder 2, %s24
      // Predicated region
      $region81: #{tpu_custom_call.1} parent=5 // pred_check
        %p1064 = pneg %p1063
      $region82: #{tpu_custom_call.1} parent=5 // pred_check_branch
        %1066 = sbr.rel (%p1064) target = $region84
      $region83: #{tpu_custom_call.1} parent=5 // pred_region
        %s1067 = ssub.s32 %s24, 2
        // Predicated region
        $region85: #{tpu_custom_call.1} parent=83 // pred_check
          %p1068 = pneg %p215
        $region86: #{tpu_custom_call.1} parent=83 // pred_check_branch
          %1070 = sbr.rel (%p1068) target = $region88
        $region87: #{tpu_custom_call.1} parent=83 // pred_region
          %s1071 = sand.u32 %s200, 1
          %s1072 = scalar_lea.sflag [#allocation4], %s1071
          %s1073 = sand.u32 %s200, 1
          %s1074 = smul.addr %s1073, 32
          %s1075 = scalar_lea.vmem [#allocation14], %s1074
          %1076 = dma.done %s1072, 512
        $region88: #{tpu_custom_call.1} parent=83 // pred_fallthru
          _
      $region84: #{tpu_custom_call.1} parent=5 // pred_fallthru
        _
    $region6: #{tpu_custom_call.1} parent=1 // loop_footer
      %s28 = sadd.s32 1, %s24
    $region7: #{tpu_custom_call.1} parent=1 // loop_footer_branch
      %23 = sbr.rel target = $region3
    $region8: #{tpu_custom_call.1} parent=1 // loop_exit
      _
    %1077 = vsyncpa [#allocation3], 1
    %s1078 = scalar_lea.sflag [#allocation3], 1
    %1079 = vsyncpa %s1078, 1
    %1080 = vsyncpa [#allocation6], 1
    %1081 = vsyncpa [#allocation9], 1
    %1082 = vsyncpa [#allocation12], 1
    %s1083 = scalar_lea.sflag [#allocation12], 1
    %1084 = vsyncpa %s1083, 1
    %1085 = vsyncpa [#allocation4], 1
    %s1086 = scalar_lea.sflag [#allocation4], 1
    %1087 = vsyncpa %s1086, 1

</llo_original>
